<compile_context>
chip_gen: v7x
topology: tpu7x:2x2x1
jax: 0.10.0
libtpu: 0.0.40
codegen_flags: <defaults>
</compile_context>

<pallas_src>
import functools

import jax
import jax.numpy as jnp
from jax.experimental import pallas as pl
from jax.experimental.pallas import tpu as pltpu


def _bart_attn_kernel(h_full_ref, h_q_ref, mask_ref,
                      wq_ref, bq_ref,
                      wk_ref, bk_ref,
                      wv_ref, bv_ref,
                      wo_ref, bo_ref,
                      out_ref,
                      k_scr, v_scr, ctx_scr,
                      *, num_heads, head_dim):
    """Grid = (batch, query_tile).  One query tile of one batch element."""
    qi = pl.program_id(1)

    # --- K / V projections: once per batch element, reused by all query tiles.
    @pl.when(qi == 0)
    def _():
        hf = h_full_ref[0]                                         # (T, E) bf16
        k = jnp.dot(hf, wk_ref[...],
                    preferred_element_type=jnp.float32) + bk_ref[...]
        v = jnp.dot(hf, wv_ref[...],
                    preferred_element_type=jnp.float32) + bv_ref[...]
        k_scr[...] = k.astype(k_scr.dtype)
        v_scr[...] = v.astype(v_scr.dtype)

    # --- Q projection for this query tile (scaling folded into wq/bq).
    hq = h_q_ref[0]                                                # (TQ, E) bf16
    q = jnp.dot(hq, wq_ref[...],
                preferred_element_type=jnp.float32) + bq_ref[...]  # (TQ, E) f32
    q = q.astype(jnp.bfloat16)                                     # MXU operand

    mask = mask_ref[0, 0].astype(jnp.float32)                      # (TQ, T)

    # --- Per-head attention (static lane slices; scores/probs die per head).
    D = head_dim
    for hd in range(num_heads):
        lo, hi = hd * D, (hd + 1) * D
        q_h = q[:, lo:hi]                                          # (TQ, D) bf16
        k_h = k_scr[:, lo:hi]                                      # (T,  D) bf16
        v_h = v_scr[:, lo:hi]                                      # (T,  D) bf16

        scores = jnp.einsum('qd,kd->qk', q_h, k_h,
                            preferred_element_type=jnp.float32) + mask
        m = jnp.max(scores, axis=-1, keepdims=True)
        p = jnp.exp(scores - m)
        denom = jnp.sum(p, axis=-1, keepdims=True)
        p = (p * pl.reciprocal(denom, approx=True)).astype(jnp.bfloat16)

        # TODO(synk): dropout(p) omitted — module default p=0.0 / eval mode.

        ctx_h = jnp.dot(p, v_h, preferred_element_type=jnp.float32)  # (TQ, D)
        ctx_scr[:, lo:hi] = ctx_h.astype(ctx_scr.dtype)

    # --- Single full-width output projection.
    out = jnp.dot(ctx_scr[...], wo_ref[...],
                  preferred_element_type=jnp.float32) + bo_ref[...]
    out_ref[0] = out.astype(out_ref.dtype)


def _vmem_limit_bytes(T, TQ, E):
    bf16, f32 = 2, 4
    weights = 4 * E * E * bf16 + 4 * E * f32
    io_blocks = 2 * (T * E * bf16 + TQ * E * bf16 + TQ * T * bf16 + TQ * E * f32)
    scratch = 2 * T * E * bf16 + TQ * E * bf16
    working = 6 * TQ * max(T, E) * f32
    need = 2 * (weights + io_blocks + scratch + working)
    # Floor at the v6e/v7x default (32 MiB), cap well under v7x's 64 MiB phys.
    return int(min(max(need, 32 * 1024 * 1024), 48 * 1024 * 1024))


def bart_attention(hidden_states, attention_mask, params, num_heads):
    """hidden_states: (B, T, E) f32; attention_mask: (B, 1, T, T) f32 additive."""
    B, T, E = hidden_states.shape
    H = num_heads
    D = E // H
    scaling = float(D) ** -0.5

    # Query tile: full T for modest sequences, 256-row tiles for long ones
    # (bounds the (TQ, T) scores block for v7x's smaller VMEM).
    TQ = 256 if (T > 256 and T % 256 == 0) else T
    NQ = T // TQ

    bf16, f32 = jnp.bfloat16, jnp.float32

    # torch Linear: y = x @ W.T + b.  Pre-transpose, cast to bf16, and fold the
    # 1/sqrt(D) scaling into the Q projection.
    wq = (params['q_w'].T * scaling).astype(bf16)
    bq = (params['q_b'] * scaling).astype(f32).reshape(1, E)
    wk = params['k_w'].T.astype(bf16)
    bk = params['k_b'].astype(f32).reshape(1, E)
    wv = params['v_w'].T.astype(bf16)
    bv = params['v_b'].astype(f32).reshape(1, E)
    wo = params['o_w'].T.astype(bf16)
    bo = params['o_b'].astype(f32).reshape(1, E)

    h_bf = hidden_states.astype(bf16)
    # Additive mask shipped in bf16 (exact for 0 / -1e9 padding masks); widen
    # to f32 in-kernel.
    mask_bf = attention_mask.astype(bf16)

    kernel = functools.partial(_bart_attn_kernel, num_heads=H, head_dim=D)
    wspec = lambda shape: pl.BlockSpec(shape, lambda b, qi, _s=len(shape): (0,) * _s)

    cost = pl.CostEstimate(
        flops=int(8 * B * T * E * E + 4 * B * T * T * E),
        transcendentals=int(B * H * T * T),
        bytes_accessed=int(B * T * E * 2 + B * T * T * 2
                           + 4 * E * E * 2 + 4 * E * 4 + B * T * E * 4),
    )

    out = pl.pallas_call(
        kernel,
        out_shape=jax.ShapeDtypeStruct((B, T, E), hidden_states.dtype),
        grid_spec=pltpu.PrefetchScalarGridSpec(
            num_scalar_prefetch=0,
            grid=(B, NQ),
            in_specs=[
                pl.BlockSpec((1, T, E), lambda b, qi: (b, 0, 0)),        # full rows (K/V)
                pl.BlockSpec((1, TQ, E), lambda b, qi: (b, qi, 0)),      # query tile
                pl.BlockSpec((1, 1, TQ, T), lambda b, qi: (b, 0, qi, 0)),  # mask rows
                wspec((E, E)), wspec((1, E)),                            # q proj
                wspec((E, E)), wspec((1, E)),                            # k proj
                wspec((E, E)), wspec((1, E)),                            # v proj
                wspec((E, E)), wspec((1, E)),                            # out proj
            ],
            out_specs=pl.BlockSpec((1, TQ, E), lambda b, qi: (b, qi, 0)),
            scratch_shapes=[
                pltpu.VMEM((T, E), bf16),    # K (per batch element)
                pltpu.VMEM((T, E), bf16),    # V (per batch element)
                pltpu.VMEM((TQ, E), bf16),   # per-head context accumulator
            ],
        ),
        compiler_params=pltpu.CompilerParams(
            dimension_semantics=("parallel", "arbitrary"),
            vmem_limit_bytes=_vmem_limit_bytes(T, TQ, E),
        ),
        cost_estimate=cost,
    )(h_bf, h_bf, mask_bf, wq, bq, wk, bk, wv, bv, wo, bo)
    return out


def reference_bart_attention(hidden_states, attention_mask, params, num_heads):
    """Pure-JAX f32 reference mirroring the PyTorch module."""
    B, T, E = hidden_states.shape
    H = num_heads
    D = E // H
    scaling = float(D) ** -0.5

    def lin(x, w, b):
        return x @ w.T + b

    q = lin(hidden_states, params['q_w'], params['q_b']) * scaling
    k = lin(hidden_states, params['k_w'], params['k_b'])
    v = lin(hidden_states, params['v_w'], params['v_b'])

    def shape(x):
        return jnp.transpose(x.reshape(B, T, H, D), (0, 2, 1, 3))

    q, k, v = shape(q), shape(k), shape(v)                       # (B, H, T, D)
    attn = jnp.einsum('bhqd,bhkd->bhqk', q, k) + attention_mask  # (B, H, T, T)
    attn = jax.nn.softmax(attn, axis=-1)
    out = jnp.einsum('bhqk,bhkd->bhqd', attn, v)                 # (B, H, T, D)
    out = jnp.transpose(out, (0, 2, 1, 3)).reshape(B, T, E)
    return lin(out, params['o_w'], params['o_b'])


if __name__ == "__main__":
    B, T, E, H = 2, 8, 32, 4

    key = jax.random.PRNGKey(0)
    keys = jax.random.split(key, 12)

    scale = 0.05
    params = {
        'q_w': jax.random.normal(keys[0], (E, E), jnp.float32) * scale,
        'q_b': jax.random.normal(keys[1], (E,), jnp.float32) * scale,
        'k_w': jax.random.normal(keys[2], (E, E), jnp.float32) * scale,
        'k_b': jax.random.normal(keys[3], (E,), jnp.float32) * scale,
        'v_w': jax.random.normal(keys[4], (E, E), jnp.float32) * scale,
        'v_b': jax.random.normal(keys[5], (E,), jnp.float32) * scale,
        'o_w': jax.random.normal(keys[6], (E, E), jnp.float32) * scale,
        'o_b': jax.random.normal(keys[7], (E,), jnp.float32) * scale,
    }

    hidden_states = jax.random.normal(keys[8], (B, T, E), jnp.float32)

    # Additive attention mask: mask out the last 3 key positions of batch 1.
    mask = jnp.zeros((B, 1, T, T), jnp.float32)
    mask = mask.at[1, 0, :, T - 3:].set(-1e9)

    out = bart_attention(hidden_states, mask, params, num_heads=H)
    out = jax.block_until_ready(out)

    ref = reference_bart_attention(hidden_states, mask, params, num_heads=H)
    assert out.shape == (B, T, E)
    # Kernel feeds the MXU bf16 operands (f32 accumulate), so compare with a
    # bf16-appropriate tolerance against the f32 reference.
    max_err = jnp.max(jnp.abs(out - ref))
    assert jnp.allclose(out, ref, atol=2e-2, rtol=2e-2), f"max abs err {max_err}"

    print("KERNEL_OK")
</pallas_src>

<mosaic_0001>
module attributes {stable_mosaic.version = 11 : i64} {
  func.func @_bart_attn_kernel(%arg0: i32, %arg1: i32, %arg2: memref<1x8x32xbf16, #tpu.memory_space<vmem>>, %arg3: memref<1x8x32xbf16, #tpu.memory_space<vmem>>, %arg4: memref<1x1x8x8xbf16, #tpu.memory_space<vmem>>, %arg5: memref<32x32xbf16, #tpu.memory_space<vmem>>, %arg6: memref<1x32xf32, #tpu.memory_space<vmem>>, %arg7: memref<32x32xbf16, #tpu.memory_space<vmem>>, %arg8: memref<1x32xf32, #tpu.memory_space<vmem>>, %arg9: memref<32x32xbf16, #tpu.memory_space<vmem>>, %arg10: memref<1x32xf32, #tpu.memory_space<vmem>>, %arg11: memref<32x32xbf16, #tpu.memory_space<vmem>>, %arg12: memref<1x32xf32, #tpu.memory_space<vmem>>, %arg13: memref<1x8x32xf32, #tpu.memory_space<vmem>>, %arg14: memref<8x32xbf16, #tpu.memory_space<vmem>>, %arg15: memref<8x32xbf16, #tpu.memory_space<vmem>>, %arg16: memref<8x32xbf16, #tpu.memory_space<vmem>>) attributes {dimension_semantics = [#tpu.dimension_semantics<parallel>, #tpu.dimension_semantics<arbitrary>], iteration_bounds = array<i64: 2, 1>, scalar_prefetch = 0 : i64, scratch_operands = 3 : i64, tpu.core_type = #tpu.core_type<tc>, window_params = [{transform_indices = @transform_0, window_bounds = array<i64: 1, 8, 32>}, {transform_indices = @transform_1, window_bounds = array<i64: 1, 8, 32>}, {transform_indices = @transform_2, window_bounds = array<i64: 1, 1, 8, 8>}, {pipeline_mode = #tpu.pipeline_mode<synchronous>, transform_indices = @transform_3, window_bounds = array<i64: 32, 32>}, {pipeline_mode = #tpu.pipeline_mode<synchronous>, transform_indices = @transform_4, window_bounds = array<i64: 1, 32>}, {pipeline_mode = #tpu.pipeline_mode<synchronous>, transform_indices = @transform_5, window_bounds = array<i64: 32, 32>}, {pipeline_mode = #tpu.pipeline_mode<synchronous>, transform_indices = @transform_6, window_bounds = array<i64: 1, 32>}, {pipeline_mode = #tpu.pipeline_mode<synchronous>, transform_indices = @transform_7, window_bounds = array<i64: 32, 32>}, {pipeline_mode = #tpu.pipeline_mode<synchronous>, transform_indices = @transform_8, window_bounds = array<i64: 1, 32>}, {pipeline_mode = #tpu.pipeline_mode<synchronous>, transform_indices = @transform_9, window_bounds = array<i64: 32, 32>}, {pipeline_mode = #tpu.pipeline_mode<synchronous>, transform_indices = @transform_10, window_bounds = array<i64: 1, 32>}, {transform_indices = @transform_11, window_bounds = array<i64: 1, 8, 32>}]} {
    %c0_i32 = arith.constant 0 : i32
    %0 = arith.cmpi eq, %arg1, %c0_i32 : i32
    %1 = arith.extui %0 : i1 to i32
    %c0_i32_0 = arith.constant 0 : i32
    %2 = arith.cmpi ne, %1, %c0_i32_0 : i32
    scf.if %2 {
      %c0_58 = arith.constant 0 : index
      %c0_59 = arith.constant 0 : index
      %c0_60 = arith.constant 0 : index
      %99 = vector.load %arg2[%c0_58, %c0_59, %c0_60] : memref<1x8x32xbf16, #tpu.memory_space<vmem>>, vector<1x8x32xbf16>
      %100 = vector.shape_cast %99 : vector<1x8x32xbf16> to vector<8x32xbf16>
      %c0_61 = arith.constant 0 : index
      %c0_62 = arith.constant 0 : index
      %101 = vector.load %arg7[%c0_61, %c0_62] : memref<32x32xbf16, #tpu.memory_space<vmem>>, vector<32x32xbf16>
      %cst_63 = arith.constant dense<0.000000e+00> : vector<8x32xf32>
      %102 = tpu.matmul %100, %101, %cst_63 {dimension_numbers = #tpu.dot_dimension_numbers<[1], [0], [0], [1], [0, 0, 1, 1], [], []>} : vector<8x32xbf16>, vector<32x32xbf16>, vector<8x32xf32> -> vector<8x32xf32>
      %c0_64 = arith.constant 0 : index
      %c0_65 = arith.constant 0 : index
      %103 = vector.load %arg8[%c0_64, %c0_65] : memref<1x32xf32, #tpu.memory_space<vmem>>, vector<1x32xf32>
      %104 = vector.broadcast %103 : vector<1x32xf32> to vector<8x32xf32>
      %105 = arith.addf %102, %104 : vector<8x32xf32>
      %c0_66 = arith.constant 0 : index
      %c0_67 = arith.constant 0 : index
      %106 = vector.load %arg9[%c0_66, %c0_67] : memref<32x32xbf16, #tpu.memory_space<vmem>>, vector<32x32xbf16>
      %cst_68 = arith.constant dense<0.000000e+00> : vector<8x32xf32>
      %107 = tpu.matmul %100, %106, %cst_68 {dimension_numbers = #tpu.dot_dimension_numbers<[1], [0], [0], [1], [0, 0, 1, 1], [], []>} : vector<8x32xbf16>, vector<32x32xbf16>, vector<8x32xf32> -> vector<8x32xf32>
      %c0_69 = arith.constant 0 : index
      %c0_70 = arith.constant 0 : index
      %108 = vector.load %arg10[%c0_69, %c0_70] : memref<1x32xf32, #tpu.memory_space<vmem>>, vector<1x32xf32>
      %109 = vector.broadcast %108 : vector<1x32xf32> to vector<8x32xf32>
      %110 = arith.addf %107, %109 : vector<8x32xf32>
      %111 = arith.truncf %105 : vector<8x32xf32> to vector<8x32xbf16>
      %c0_71 = arith.constant 0 : index
      %c0_72 = arith.constant 0 : index
      %112 = vector.load %arg14[%c0_71, %c0_72] : memref<8x32xbf16, #tpu.memory_space<vmem>>, vector<8x32xbf16>
      tpu.vector_store %arg14[%c0_71, %c0_72], %111 {strides = array<i32>} : memref<8x32xbf16, #tpu.memory_space<vmem>>, vector<8x32xbf16>,
      %113 = arith.truncf %110 : vector<8x32xf32> to vector<8x32xbf16>
      %c0_73 = arith.constant 0 : index
      %c0_74 = arith.constant 0 : index
      %114 = vector.load %arg15[%c0_73, %c0_74] : memref<8x32xbf16, #tpu.memory_space<vmem>>, vector<8x32xbf16>
      tpu.vector_store %arg15[%c0_73, %c0_74], %113 {strides = array<i32>} : memref<8x32xbf16, #tpu.memory_space<vmem>>, vector<8x32xbf16>,
    } else {
    }
    %c0 = arith.constant 0 : index
    %c0_1 = arith.constant 0 : index
    %c0_2 = arith.constant 0 : index
    %3 = vector.load %arg3[%c0, %c0_1, %c0_2] : memref<1x8x32xbf16, #tpu.memory_space<vmem>>, vector<1x8x32xbf16>
    %4 = vector.shape_cast %3 : vector<1x8x32xbf16> to vector<8x32xbf16>
    %c0_3 = arith.constant 0 : index
    %c0_4 = arith.constant 0 : index
    %5 = vector.load %arg5[%c0_3, %c0_4] : memref<32x32xbf16, #tpu.memory_space<vmem>>, vector<32x32xbf16>
    %cst = arith.constant dense<0.000000e+00> : vector<8x32xf32>
    %6 = tpu.matmul %4, %5, %cst {dimension_numbers = #tpu.dot_dimension_numbers<[1], [0], [0], [1], [0, 0, 1, 1], [], []>} : vector<8x32xbf16>, vector<32x32xbf16>, vector<8x32xf32> -> vector<8x32xf32>
    %c0_5 = arith.constant 0 : index
    %c0_6 = arith.constant 0 : index
    %7 = vector.load %arg6[%c0_5, %c0_6] : memref<1x32xf32, #tpu.memory_space<vmem>>, vector<1x32xf32>
    %8 = vector.broadcast %7 : vector<1x32xf32> to vector<8x32xf32>
    %9 = arith.addf %6, %8 : vector<8x32xf32>
    %10 = arith.truncf %9 : vector<8x32xf32> to vector<8x32xbf16>
    %c0_7 = arith.constant 0 : index
    %c0_8 = arith.constant 0 : index
    %c0_9 = arith.constant 0 : index
    %c0_10 = arith.constant 0 : index
    %11 = vector.load %arg4[%c0_7, %c0_8, %c0_9, %c0_10] : memref<1x1x8x8xbf16, #tpu.memory_space<vmem>>, vector<1x1x8x8xbf16>
    %12 = vector.shape_cast %11 : vector<1x1x8x8xbf16> to vector<8x8xbf16>
    %13 = arith.extf %12 : vector<8x8xbf16> to vector<8x8xf32>
    %14 = vector.extract_strided_slice %10 {offsets = [0, 0], sizes = [8, 8], strides = [1, 1]} : vector<8x32xbf16> to vector<8x8xbf16>
    %c0_11 = arith.constant 0 : index
    %c0_12 = arith.constant 0 : index
    %15 = vector.load %arg14[%c0_11, %c0_12] : memref<8x32xbf16, #tpu.memory_space<vmem>>, vector<8x8xbf16>
    %c0_13 = arith.constant 0 : index
    %c0_14 = arith.constant 0 : index
    %16 = vector.load %arg15[%c0_13, %c0_14] : memref<8x32xbf16, #tpu.memory_space<vmem>>, vector<8x8xbf16>
    "tpu.trace_start"() <{level = 10 : i32, message = "qd,kd->qk"}> : () -> ()
    %cst_15 = arith.constant dense<0.000000e+00> : vector<8x8xf32>
    %17 = tpu.matmul %14, %15, %cst_15 {dimension_numbers = #tpu.dot_dimension_numbers<[1], [1], [0], [0], [0, 0, 1, 0], [], []>} : vector<8x8xbf16>, vector<8x8xbf16>, vector<8x8xf32> -> vector<8x8xf32>
    "tpu.trace_stop"() : () -> ()
    %18 = arith.addf %17, %13 : vector<8x8xf32>
    %cst_16 = arith.constant dense<0xFF800000> : vector<8xf32>
    %19 = vector.multi_reduction <maximumf>, %18, %cst_16 [1] : vector<8x8xf32> to vector<8xf32>
    %20 = vector.shape_cast %19 : vector<8xf32> to vector<8x1xf32>
    %21 = vector.broadcast %20 : vector<8x1xf32> to vector<8x8xf32>
    %22 = arith.subf %18, %21 : vector<8x8xf32>
    %23 = math.exp %22 : vector<8x8xf32>
    %cst_17 = arith.constant dense<0.000000e+00> : vector<8xf32>
    %24 = vector.multi_reduction <add>, %23, %cst_17 [1] : vector<8x8xf32> to vector<8xf32>
    %25 = vector.shape_cast %24 : vector<8xf32> to vector<8x1xf32>
    %26 = tpu.reciprocal %25 {approx = true} : vector<8x1xf32> -> vector<8x1xf32>
    %27 = vector.broadcast %26 : vector<8x1xf32> to vector<8x8xf32>
    %28 = arith.mulf %23, %27 : vector<8x8xf32>
    %29 = arith.truncf %28 : vector<8x8xf32> to vector<8x8xbf16>
    %cst_18 = arith.constant dense<0.000000e+00> : vector<8x8xf32>
    %30 = tpu.matmul %29, %16, %cst_18 {dimension_numbers = #tpu.dot_dimension_numbers<[1], [0], [0], [1], [0, 0, 1, 1], [], []>} : vector<8x8xbf16>, vector<8x8xbf16>, vector<8x8xf32> -> vector<8x8xf32>
    %31 = arith.truncf %30 : vector<8x8xf32> to vector<8x8xbf16>
    %c0_19 = arith.constant 0 : index
    %c0_20 = arith.constant 0 : index
    %32 = vector.load %arg16[%c0_19, %c0_20] : memref<8x32xbf16, #tpu.memory_space<vmem>>, vector<8x8xbf16>
    tpu.vector_store %arg16[%c0_19, %c0_20], %31 {strides = array<i32>} : memref<8x32xbf16, #tpu.memory_space<vmem>>, vector<8x8xbf16>,
    %33 = vector.extract_strided_slice %10 {offsets = [0, 8], sizes = [8, 8], strides = [1, 1]} : vector<8x32xbf16> to vector<8x8xbf16>
    %c0_21 = arith.constant 0 : index
    %c8 = arith.constant 8 : index
    %34 = vector.load %arg14[%c0_21, %c8] : memref<8x32xbf16, #tpu.memory_space<vmem>>, vector<8x8xbf16>
    %c0_22 = arith.constant 0 : index
    %c8_23 = arith.constant 8 : index
    %35 = vector.load %arg15[%c0_22, %c8_23] : memref<8x32xbf16, #tpu.memory_space<vmem>>, vector<8x8xbf16>
    "tpu.trace_start"() <{level = 10 : i32, message = "qd,kd->qk"}> : () -> ()
    %cst_24 = arith.constant dense<0.000000e+00> : vector<8x8xf32>
    %36 = tpu.matmul %33, %34, %cst_24 {dimension_numbers = #tpu.dot_dimension_numbers<[1], [1], [0], [0], [0, 0, 1, 0], [], []>} : vector<8x8xbf16>, vector<8x8xbf16>, vector<8x8xf32> -> vector<8x8xf32>
    "tpu.trace_stop"() : () -> ()
    %37 = arith.addf %36, %13 : vector<8x8xf32>
    %cst_25 = arith.constant dense<0xFF800000> : vector<8xf32>
    %38 = vector.multi_reduction <maximumf>, %37, %cst_25 [1] : vector<8x8xf32> to vector<8xf32>
    %39 = vector.shape_cast %38 : vector<8xf32> to vector<8x1xf32>
    %40 = vector.broadcast %39 : vector<8x1xf32> to vector<8x8xf32>
    %41 = arith.subf %37, %40 : vector<8x8xf32>
    %42 = math.exp %41 : vector<8x8xf32>
    %cst_26 = arith.constant dense<0.000000e+00> : vector<8xf32>
    %43 = vector.multi_reduction <add>, %42, %cst_26 [1] : vector<8x8xf32> to vector<8xf32>
    %44 = vector.shape_cast %43 : vector<8xf32> to vector<8x1xf32>
    %45 = tpu.reciprocal %44 {approx = true} : vector<8x1xf32> -> vector<8x1xf32>
    %46 = vector.broadcast %45 : vector<8x1xf32> to vector<8x8xf32>
    %47 = arith.mulf %42, %46 : vector<8x8xf32>
    %48 = arith.truncf %47 : vector<8x8xf32> to vector<8x8xbf16>
    %cst_27 = arith.constant dense<0.000000e+00> : vector<8x8xf32>
    %49 = tpu.matmul %48, %35, %cst_27 {dimension_numbers = #tpu.dot_dimension_numbers<[1], [0], [0], [1], [0, 0, 1, 1], [], []>} : vector<8x8xbf16>, vector<8x8xbf16>, vector<8x8xf32> -> vector<8x8xf32>
    %50 = arith.truncf %49 : vector<8x8xf32> to vector<8x8xbf16>
    %c0_28 = arith.constant 0 : index
    %c8_29 = arith.constant 8 : index
    %51 = vector.load %arg16[%c0_28, %c8_29] : memref<8x32xbf16, #tpu.memory_space<vmem>>, vector<8x8xbf16>
    tpu.vector_store %arg16[%c0_28, %c8_29], %50 {strides = array<i32>} : memref<8x32xbf16, #tpu.memory_space<vmem>>, vector<8x8xbf16>,
    %52 = vector.extract_strided_slice %10 {offsets = [0, 16], sizes = [8, 8], strides = [1, 1]} : vector<8x32xbf16> to vector<8x8xbf16>
    %c0_30 = arith.constant 0 : index
    %c16 = arith.constant 16 : index
    %53 = vector.load %arg14[%c0_30, %c16] : memref<8x32xbf16, #tpu.memory_space<vmem>>, vector<8x8xbf16>
    %c0_31 = arith.constant 0 : index
    %c16_32 = arith.constant 16 : index
    %54 = vector.load %arg15[%c0_31, %c16_32] : memref<8x32xbf16, #tpu.memory_space<vmem>>, vector<8x8xbf16>
    "tpu.trace_start"() <{level = 10 : i32, message = "qd,kd->qk"}> : () -> ()
    %cst_33 = arith.constant dense<0.000000e+00> : vector<8x8xf32>
    %55 = tpu.matmul %52, %53, %cst_33 {dimension_numbers = #tpu.dot_dimension_numbers<[1], [1], [0], [0], [0, 0, 1, 0], [], []>} : vector<8x8xbf16>, vector<8x8xbf16>, vector<8x8xf32> -> vector<8x8xf32>
    "tpu.trace_stop"() : () -> ()
    %56 = arith.addf %55, %13 : vector<8x8xf32>
    %cst_34 = arith.constant dense<0xFF800000> : vector<8xf32>
    %57 = vector.multi_reduction <maximumf>, %56, %cst_34 [1] : vector<8x8xf32> to vector<8xf32>
    %58 = vector.shape_cast %57 : vector<8xf32> to vector<8x1xf32>
    %59 = vector.broadcast %58 : vector<8x1xf32> to vector<8x8xf32>
    %60 = arith.subf %56, %59 : vector<8x8xf32>
    %61 = math.exp %60 : vector<8x8xf32>
    %cst_35 = arith.constant dense<0.000000e+00> : vector<8xf32>
    %62 = vector.multi_reduction <add>, %61, %cst_35 [1] : vector<8x8xf32> to vector<8xf32>
    %63 = vector.shape_cast %62 : vector<8xf32> to vector<8x1xf32>
    %64 = tpu.reciprocal %63 {approx = true} : vector<8x1xf32> -> vector<8x1xf32>
    %65 = vector.broadcast %64 : vector<8x1xf32> to vector<8x8xf32>
    %66 = arith.mulf %61, %65 : vector<8x8xf32>
    %67 = arith.truncf %66 : vector<8x8xf32> to vector<8x8xbf16>
    %cst_36 = arith.constant dense<0.000000e+00> : vector<8x8xf32>
    %68 = tpu.matmul %67, %54, %cst_36 {dimension_numbers = #tpu.dot_dimension_numbers<[1], [0], [0], [1], [0, 0, 1, 1], [], []>} : vector<8x8xbf16>, vector<8x8xbf16>, vector<8x8xf32> -> vector<8x8xf32>
    %69 = arith.truncf %68 : vector<8x8xf32> to vector<8x8xbf16>
    %c0_37 = arith.constant 0 : index
    %c16_38 = arith.constant 16 : index
    %70 = vector.load %arg16[%c0_37, %c16_38] : memref<8x32xbf16, #tpu.memory_space<vmem>>, vector<8x8xbf16>
    tpu.vector_store %arg16[%c0_37, %c16_38], %69 {strides = array<i32>} : memref<8x32xbf16, #tpu.memory_space<vmem>>, vector<8x8xbf16>,
    %71 = vector.extract_strided_slice %10 {offsets = [0, 24], sizes = [8, 8], strides = [1, 1]} : vector<8x32xbf16> to vector<8x8xbf16>
    %c0_39 = arith.constant 0 : index
    %c24 = arith.constant 24 : index
    %72 = vector.load %arg14[%c0_39, %c24] : memref<8x32xbf16, #tpu.memory_space<vmem>>, vector<8x8xbf16>
    %c0_40 = arith.constant 0 : index
    %c24_41 = arith.constant 24 : index
    %73 = vector.load %arg15[%c0_40, %c24_41] : memref<8x32xbf16, #tpu.memory_space<vmem>>, vector<8x8xbf16>
    "tpu.trace_start"() <{level = 10 : i32, message = "qd,kd->qk"}> : () -> ()
    %cst_42 = arith.constant dense<0.000000e+00> : vector<8x8xf32>
    %74 = tpu.matmul %71, %72, %cst_42 {dimension_numbers = #tpu.dot_dimension_numbers<[1], [1], [0], [0], [0, 0, 1, 0], [], []>} : vector<8x8xbf16>, vector<8x8xbf16>, vector<8x8xf32> -> vector<8x8xf32>
    "tpu.trace_stop"() : () -> ()
    %75 = arith.addf %74, %13 : vector<8x8xf32>
    %cst_43 = arith.constant dense<0xFF800000> : vector<8xf32>
    %76 = vector.multi_reduction <maximumf>, %75, %cst_43 [1] : vector<8x8xf32> to vector<8xf32>
    %77 = vector.shape_cast %76 : vector<8xf32> to vector<8x1xf32>
    %78 = vector.broadcast %77 : vector<8x1xf32> to vector<8x8xf32>
    %79 = arith.subf %75, %78 : vector<8x8xf32>
    %80 = math.exp %79 : vector<8x8xf32>
    %cst_44 = arith.constant dense<0.000000e+00> : vector<8xf32>
    %81 = vector.multi_reduction <add>, %80, %cst_44 [1] : vector<8x8xf32> to vector<8xf32>
    %82 = vector.shape_cast %81 : vector<8xf32> to vector<8x1xf32>
    %83 = tpu.reciprocal %82 {approx = true} : vector<8x1xf32> -> vector<8x1xf32>
    %84 = vector.broadcast %83 : vector<8x1xf32> to vector<8x8xf32>
    %85 = arith.mulf %80, %84 : vector<8x8xf32>
    %86 = arith.truncf %85 : vector<8x8xf32> to vector<8x8xbf16>
    %cst_45 = arith.constant dense<0.000000e+00> : vector<8x8xf32>
    %87 = tpu.matmul %86, %73, %cst_45 {dimension_numbers = #tpu.dot_dimension_numbers<[1], [0], [0], [1], [0, 0, 1, 1], [], []>} : vector<8x8xbf16>, vector<8x8xbf16>, vector<8x8xf32> -> vector<8x8xf32>
    %88 = arith.truncf %87 : vector<8x8xf32> to vector<8x8xbf16>
    %c0_46 = arith.constant 0 : index
    %c24_47 = arith.constant 24 : index
    %89 = vector.load %arg16[%c0_46, %c24_47] : memref<8x32xbf16, #tpu.memory_space<vmem>>, vector<8x8xbf16>
    tpu.vector_store %arg16[%c0_46, %c24_47], %88 {strides = array<i32>} : memref<8x32xbf16, #tpu.memory_space<vmem>>, vector<8x8xbf16>,
    %c0_48 = arith.constant 0 : index
    %c0_49 = arith.constant 0 : index
    %90 = vector.load %arg16[%c0_48, %c0_49] : memref<8x32xbf16, #tpu.memory_space<vmem>>, vector<8x32xbf16>
    %c0_50 = arith.constant 0 : index
    %c0_51 = arith.constant 0 : index
    %91 = vector.load %arg11[%c0_50, %c0_51] : memref<32x32xbf16, #tpu.memory_space<vmem>>, vector<32x32xbf16>
    %cst_52 = arith.constant dense<0.000000e+00> : vector<8x32xf32>
    %92 = tpu.matmul %90, %91, %cst_52 {dimension_numbers = #tpu.dot_dimension_numbers<[1], [0], [0], [1], [0, 0, 1, 1], [], []>} : vector<8x32xbf16>, vector<32x32xbf16>, vector<8x32xf32> -> vector<8x32xf32>
    %c0_53 = arith.constant 0 : index
    %c0_54 = arith.constant 0 : index
    %93 = vector.load %arg12[%c0_53, %c0_54] : memref<1x32xf32, #tpu.memory_space<vmem>>, vector<1x32xf32>
    %94 = vector.broadcast %93 : vector<1x32xf32> to vector<8x32xf32>
    %95 = arith.addf %92, %94 : vector<8x32xf32>
    %c0_55 = arith.constant 0 : index
    %c0_56 = arith.constant 0 : index
    %c0_57 = arith.constant 0 : index
    %96 = vector.load %arg13[%c0_55, %c0_56, %c0_57] : memref<1x8x32xf32, #tpu.memory_space<vmem>>, vector<1x8x32xf32>
    %97 = vector.shape_cast %96 : vector<1x8x32xf32> to vector<8x32xf32>
    %98 = vector.shape_cast %95 : vector<8x32xf32> to vector<1x8x32xf32>
    tpu.vector_store %arg13[%c0_55, %c0_56, %c0_57], %98 {strides = array<i32>} : memref<1x8x32xf32, #tpu.memory_space<vmem>>, vector<1x8x32xf32>,
    return
  }
  func.func @transform_0(%arg0: i32, %arg1: i32) -> (i32, i32, i32) {
    %c0_i32 = arith.constant 0 : i32
    %c0_i32_0 = arith.constant 0 : i32
    %c0_i32_1 = arith.constant 0 : i32
    return %arg0, %c0_i32, %c0_i32_0 : i32, i32, i32
  }
  func.func @transform_1(%arg0: i32, %arg1: i32) -> (i32, i32, i32) {
    %c0_i32 = arith.constant 0 : i32
    %c0_i32_0 = arith.constant 0 : i32
    return %arg0, %arg1, %c0_i32 : i32, i32, i32
  }
  func.func @transform_2(%arg0: i32, %arg1: i32) -> (i32, i32, i32, i32) {
    %c0_i32 = arith.constant 0 : i32
    %c0_i32_0 = arith.constant 0 : i32
    %c0_i32_1 = arith.constant 0 : i32
    return %arg0, %c0_i32, %arg1, %c0_i32_0 : i32, i32, i32, i32
  }
  func.func @transform_3(%arg0: i32, %arg1: i32) -> (i32, i32) {
    %c0_i32 = arith.constant 0 : i32
    %c0_i32_0 = arith.constant 0 : i32
    %c0_i32_1 = arith.constant 0 : i32
    return %c0_i32, %c0_i32_0 : i32, i32
  }
  func.func @transform_4(%arg0: i32, %arg1: i32) -> (i32, i32) {
    %c0_i32 = arith.constant 0 : i32
    %c0_i32_0 = arith.constant 0 : i32
    %c0_i32_1 = arith.constant 0 : i32
    return %c0_i32, %c0_i32_0 : i32, i32
  }
  func.func @transform_5(%arg0: i32, %arg1: i32) -> (i32, i32) {
    %c0_i32 = arith.constant 0 : i32
    %c0_i32_0 = arith.constant 0 : i32
    %c0_i32_1 = arith.constant 0 : i32
    return %c0_i32, %c0_i32_0 : i32, i32
  }
  func.func @transform_6(%arg0: i32, %arg1: i32) -> (i32, i32) {
    %c0_i32 = arith.constant 0 : i32
    %c0_i32_0 = arith.constant 0 : i32
    %c0_i32_1 = arith.constant 0 : i32
    return %c0_i32, %c0_i32_0 : i32, i32
  }
  func.func @transform_7(%arg0: i32, %arg1: i32) -> (i32, i32) {
    %c0_i32 = arith.constant 0 : i32
    %c0_i32_0 = arith.constant 0 : i32
    %c0_i32_1 = arith.constant 0 : i32
    return %c0_i32, %c0_i32_0 : i32, i32
  }
  func.func @transform_8(%arg0: i32, %arg1: i32) -> (i32, i32) {
    %c0_i32 = arith.constant 0 : i32
    %c0_i32_0 = arith.constant 0 : i32
    %c0_i32_1 = arith.constant 0 : i32
    return %c0_i32, %c0_i32_0 : i32, i32
  }
  func.func @transform_9(%arg0: i32, %arg1: i32) -> (i32, i32) {
    %c0_i32 = arith.constant 0 : i32
    %c0_i32_0 = arith.constant 0 : i32
    %c0_i32_1 = arith.constant 0 : i32
    return %c0_i32, %c0_i32_0 : i32, i32
  }
  func.func @transform_10(%arg0: i32, %arg1: i32) -> (i32, i32) {
    %c0_i32 = arith.constant 0 : i32
    %c0_i32_0 = arith.constant 0 : i32
    %c0_i32_1 = arith.constant 0 : i32
    return %c0_i32, %c0_i32_0 : i32, i32
  }
  func.func @transform_11(%arg0: i32, %arg1: i32) -> (i32, i32, i32) {
    %c0_i32 = arith.constant 0 : i32
    %c0_i32_0 = arith.constant 0 : i32
    return %arg0, %arg1, %c0_i32 : i32, i32, i32
  }
}

</mosaic_0001>

<llo_original>
// kernel: tpu_custom_call.1
$region0: #{tpu_custom_call.1}
  #allocation0 [shape = 'u32[]', space=smem, size = 0x4, offset = 0x4, fixed_abs, tag = 'smem constant byte address 0x4 - core index']
  #allocation1 [shape = 'u32[144,128]{1,0:T(1,128)}', space=vmem, size = 0x12000, scoped, tag = 'internal scratch']
  #allocation2 [shape = 'bf16[8,32]{1,0:T(8,128)(2,1)}', space=vmem, size = 0x800, scoped, tag = 'scratch operand']
  #allocation3 [shape = 'bf16[8,32]{1,0:T(8,128)(2,1)}', space=vmem, size = 0x800, scoped, tag = 'scratch operand']
  #allocation4 [shape = 'bf16[8,32]{1,0:T(8,128)(2,1)}', space=vmem, size = 0x800, scoped, tag = 'scratch operand']
  %s0 = inlined_call_operand.hbm [shape: bf16[2,8,32], index: 0, kind: input, shape index: {}]
  %s1 = inlined_call_operand.hbm [shape: bf16[2,8,32], index: 1, kind: input, shape index: {}]
  %s2 = inlined_call_operand.hbm [shape: bf16[2,1,8,8], index: 2, kind: input, shape index: {}]
  %s3 = inlined_call_operand.hbm [shape: bf16[32,32], index: 3, kind: input, shape index: {}]
  %s4 = inlined_call_operand.vmem [shape: f32[1,32], index: 4, kind: input, shape index: {}]
  %s5 = inlined_call_operand.vmem [shape: bf16[32,32], index: 5, kind: input, shape index: {}]
  %s6 = inlined_call_operand.vmem [shape: f32[1,32], index: 6, kind: input, shape index: {}]
  %s7 = inlined_call_operand.hbm [shape: bf16[32,32], index: 7, kind: input, shape index: {}]
  %s8 = inlined_call_operand.hbm [shape: f32[1,32], index: 8, kind: input, shape index: {}]
  %s9 = inlined_call_operand.vmem [shape: bf16[32,32], index: 9, kind: input, shape index: {}]
  %s10 = inlined_call_operand.vmem [shape: f32[1,32], index: 10, kind: input, shape index: {}]
  %s11 = inlined_call_operand.hbm [shape: f32[2,8,32], index: 11, kind: output, shape index: {}]
  %s12 = sld [smem:[#allocation0]]
  $region105: #{tpu_custom_call.1} parent=0
    _
  %s14 = ssub.s32 1, %s12
  %s15 = scalar_select 0, %s14, %s12
  $region1: #{tpu_custom_call.1} parent=0
    #allocation5 [shape = 'u8[4096]{0}', space=vmem, size = 0x1000, scoped, tag = 'input window, operand 0']
    #allocation6 [shape = 's32[2]{0}', space=sflag, size = 0x8, scoped, tag = 'scoped memory for tpu_custom_call.1']
    #allocation7 [shape = 's32[2]{0}', space=sflag, size = 0x8, scoped, tag = 'scoped memory for tpu_custom_call.1']
    #allocation8 [shape = 'u8[4096]{0}', space=vmem, size = 0x1000, scoped, tag = 'input window, operand 1']
    #allocation9 [shape = 's32[2]{0}', space=sflag, size = 0x8, scoped, tag = 'scoped memory for tpu_custom_call.1']
    #allocation10 [shape = 'u8[4096]{0}', space=vmem, size = 0x1000, scoped, tag = 'input window, operand 2']
    #allocation11 [shape = 'u8[8192]{0}', space=vmem, size = 0x2000, scoped, tag = 'input window, operand 3, single buffered']
    #allocation12 [shape = 's32[1]{0}', space=sflag, size = 0x4, scoped, tag = 'scoped memory for tpu_custom_call.1']
    #allocation13 [shape = 'u8[8192]{0}', space=vmem, size = 0x2000, scoped, tag = 'input window, operand 7, single buffered']
    #allocation14 [shape = 'u8[512]{0}', space=vmem, size = 0x400, scoped, tag = 'input window, operand 8, single buffered']
    #allocation15 [shape = 's32[1]{0}', space=sflag, size = 0x4, scoped, tag = 'scoped memory for tpu_custom_call.1']
    #allocation16 [shape = 'u8[8192]{0}', space=vmem, size = 0x2000, scoped, tag = 'output window, operand 0']
    %16 = vsyncpa [#allocation6], 0
    %s17 = scalar_lea.sflag [#allocation6], 1
    %18 = vsyncpa %s17, 0
    %19 = vsyncpa [#allocation9], 0
    %s20 = scalar_lea.sflag [#allocation9], 1
    %21 = vsyncpa %s20, 0
    %22 = vsyncpa [#allocation12], 0
    %23 = vsyncpa [#allocation15], 0
    %24 = vsyncpa [#allocation7], 0
    %s25 = scalar_lea.sflag [#allocation7], 1
    %26 = vsyncpa %s25, 0
    loop: start=0, step=1, limit=4
    $region2: #{tpu_custom_call.1} parent=1 // loop_pre_header
      _
    $region3: #{tpu_custom_call.1} parent=1 // loop_header
      %s28 = sphi 0, %s32
      %p29 = scmp.ge.s32.totalorder %s28, 4
      %s35 = sphi 0, %s47
      %s36 = sphi 0, %s43
      %s37 = sphi 0, %s35
      %s38 = sphi 0, %s36
      %s39 = sphi 0, %s37
      %s40 = sphi 0, %s38
      %s50 = sphi 0, %s52
      %s53 = sphi 0, %s50
      %s54 = sphi 0, %s53
      %s70 = sphi 0, %s54
      %s78 = sphi 0, %s80
      %s81 = sphi 0, %s78
      %s82 = sphi 0, %s81
      %s98 = sphi 0, %s82
      %s106 = sphi 0, %s108
      %s109 = sphi 0, %s106
      %s110 = sphi 0, %s109
      %s126 = sphi 0, %s110
      %s130 = sphi 0, %s130
      %s132 = sphi 0, %s130
      %s133 = sphi 0, %s132
      %s147 = sphi 0, %s133
      %s151 = sphi 0, %s151
      %s153 = sphi 0, %s151
      %s154 = sphi 0, %s153
      %s168 = sphi 0, %s154
      %s172 = sphi 0, %s172
      %s174 = sphi 0, %s172
      %s175 = sphi 0, %s174
      %s189 = sphi 0, %s175
      %s193 = sphi 0, %s193
      %s195 = sphi 0, %s193
      %s196 = sphi 0, %s195
      %s210 = sphi 0, %s196
      %s214 = sphi 0, %s214
      %s216 = sphi 0, %s214
      %s217 = sphi 0, %s216
      %s231 = sphi 0, %s217
      %s235 = sphi 0, %s235
      %s237 = sphi 0, %s235
      %s238 = sphi 0, %s237
      %s252 = sphi 0, %s238
      %s256 = sphi 0, %s256
      %s258 = sphi 0, %s256
      %s259 = sphi 0, %s258
      %s273 = sphi 0, %s259
      %s277 = sphi 0, %s277
      %s279 = sphi 0, %s277
      %s280 = sphi 0, %s279
      %s294 = sphi 0, %s280
      %s302 = sphi 0, %s304
      %s305 = sphi 0, %s302
      %s306 = sphi 0, %s305
      %s322 = sphi 0, %s306
    $region4: #{tpu_custom_call.1} parent=1 // loop_header_branch
      %31 = sbr.rel (%p29) target = $region8
    $region5: #{tpu_custom_call.1} parent=1 // loop_body
      %s33 = ssub.s32 %s28, 1
      %s34 = ssub.s32 %s28, 2
      %s41 = sadd.s32 1, %s36
      %p42 = scmp.ge.s32.totalorder %s41, 1
      %s43 = scalar_select %p42, 0, %s41
      %s44 = sadd.s32 1, %s35
      %s45 = scalar_select %p42, %s44, %s35
      %p46 = scmp.ge.s32.totalorder %s45, 2
      %s47 = scalar_select %p46, 0, %s45
      %s48 = ssub.s32 %s35, %s47
      %p49 = scmp.eq.s32.totalorder %s48, 0
      %s51 = sadd.s32 %s50, 1
      %s52 = scalar_select %p49, %s50, %s51
      %p55 = pneg %p49
      %p56 = scmp.eq.s32.totalorder %s28, 1
      %p57 = por %p55, %p56
      %p58 = scmp.ne.s32.totalorder %s50, %s53
      %p59 = scmp.eq.s32.totalorder %s28, 0
      %p60 = por %p58, %p59
      %p61 = scmp.ne.s32.totalorder %s50, %s53
      %p62 = scmp.eq.s32.totalorder %s33, 1
      %p63 = por %p61, %p62
      %p64 = scmp.ne.s32.totalorder %s53, %s54
      %p65 = scmp.eq.s32.totalorder %s33, 0
      %p66 = por %p64, %p65
      %p67 = scmp.ne.s32.totalorder %s53, %s54
      %p68 = scmp.eq.s32.totalorder %s34, 1
      %p69 = por %p67, %p68
      %p71 = scmp.ne.s32.totalorder %s54, %s70
      %p72 = scmp.eq.s32.totalorder %s34, 0
      %p73 = por %p71, %p72
      %s74 = ssub.s32 %s35, %s47
      %s75 = ssub.s32 %s36, %s43
      %s76 = sor.u32 %s74, %s75
      %p77 = scmp.eq.s32.totalorder %s76, 0
      %s79 = sadd.s32 %s78, 1
      %s80 = scalar_select %p77, %s78, %s79
      %p83 = pneg %p77
      %p84 = scmp.eq.s32.totalorder %s28, 1
      %p85 = por %p83, %p84
      %p86 = scmp.ne.s32.totalorder %s78, %s81
      %p87 = scmp.eq.s32.totalorder %s28, 0
      %p88 = por %p86, %p87
      %p89 = scmp.ne.s32.totalorder %s78, %s81
      %p90 = scmp.eq.s32.totalorder %s33, 1
      %p91 = por %p89, %p90
      %p92 = scmp.ne.s32.totalorder %s81, %s82
      %p93 = scmp.eq.s32.totalorder %s33, 0
      %p94 = por %p92, %p93
      %p95 = scmp.ne.s32.totalorder %s81, %s82
      %p96 = scmp.eq.s32.totalorder %s34, 1
      %p97 = por %p95, %p96
      %p99 = scmp.ne.s32.totalorder %s82, %s98
      %p100 = scmp.eq.s32.totalorder %s34, 0
      %p101 = por %p99, %p100
      %s102 = ssub.s32 %s35, %s47
      %s103 = ssub.s32 %s36, %s43
      %s104 = sor.u32 %s102, %s103
      %p105 = scmp.eq.s32.totalorder %s104, 0
      %s107 = sadd.s32 %s106, 1
      %s108 = scalar_select %p105, %s106, %s107
      %p111 = pneg %p105
      %p112 = scmp.eq.s32.totalorder %s28, 1
      %p113 = por %p111, %p112
      %p114 = scmp.ne.s32.totalorder %s106, %s109
      %p115 = scmp.eq.s32.totalorder %s28, 0
      %p116 = por %p114, %p115
      %p117 = scmp.ne.s32.totalorder %s106, %s109
      %p118 = scmp.eq.s32.totalorder %s33, 1
      %p119 = por %p117, %p118
      %p120 = scmp.ne.s32.totalorder %s109, %s110
      %p121 = scmp.eq.s32.totalorder %s33, 0
      %p122 = por %p120, %p121
      %p123 = scmp.ne.s32.totalorder %s109, %s110
      %p124 = scmp.eq.s32.totalorder %s34, 1
      %p125 = por %p123, %p124
      %p127 = scmp.ne.s32.totalorder %s110, %s126
      %p128 = scmp.eq.s32.totalorder %s34, 0
      %p129 = por %p127, %p128
      %s131 = sadd.s32 %s130, 1
      %p134 = scmp.eq.s32.totalorder %s28, 1
      %p135 = scmp.ne.s32.totalorder %s130, %s132
      %p136 = scmp.eq.s32.totalorder %s28, 0
      %p137 = por %p135, %p136
      %p138 = scmp.ne.s32.totalorder %s130, %s132
      %p139 = scmp.eq.s32.totalorder %s33, 1
      %p140 = por %p138, %p139
      %p141 = scmp.ne.s32.totalorder %s132, %s133
      %p142 = scmp.eq.s32.totalorder %s33, 0
      %p143 = por %p141, %p142
      %p144 = scmp.ne.s32.totalorder %s132, %s133
      %p145 = scmp.eq.s32.totalorder %s34, 1
      %p146 = por %p144, %p145
      %p148 = scmp.ne.s32.totalorder %s133, %s147
      %p149 = scmp.eq.s32.totalorder %s34, 0
      %p150 = por %p148, %p149
      %s152 = sadd.s32 %s151, 1
      %p155 = scmp.eq.s32.totalorder %s28, 1
      %p156 = scmp.ne.s32.totalorder %s151, %s153
      %p157 = scmp.eq.s32.totalorder %s28, 0
      %p158 = por %p156, %p157
      %p159 = scmp.ne.s32.totalorder %s151, %s153
      %p160 = scmp.eq.s32.totalorder %s33, 1
      %p161 = por %p159, %p160
      %p162 = scmp.ne.s32.totalorder %s153, %s154
      %p163 = scmp.eq.s32.totalorder %s33, 0
      %p164 = por %p162, %p163
      %p165 = scmp.ne.s32.totalorder %s153, %s154
      %p166 = scmp.eq.s32.totalorder %s34, 1
      %p167 = por %p165, %p166
      %p169 = scmp.ne.s32.totalorder %s154, %s168
      %p170 = scmp.eq.s32.totalorder %s34, 0
      %p171 = por %p169, %p170
      %s173 = sadd.s32 %s172, 1
      %p176 = scmp.eq.s32.totalorder %s28, 1
      %p177 = scmp.ne.s32.totalorder %s172, %s174
      %p178 = scmp.eq.s32.totalorder %s28, 0
      %p179 = por %p177, %p178
      %p180 = scmp.ne.s32.totalorder %s172, %s174
      %p181 = scmp.eq.s32.totalorder %s33, 1
      %p182 = por %p180, %p181
      %p183 = scmp.ne.s32.totalorder %s174, %s175
      %p184 = scmp.eq.s32.totalorder %s33, 0
      %p185 = por %p183, %p184
      %p186 = scmp.ne.s32.totalorder %s174, %s175
      %p187 = scmp.eq.s32.totalorder %s34, 1
      %p188 = por %p186, %p187
      %p190 = scmp.ne.s32.totalorder %s175, %s189
      %p191 = scmp.eq.s32.totalorder %s34, 0
      %p192 = por %p190, %p191
      %s194 = sadd.s32 %s193, 1
      %p197 = scmp.eq.s32.totalorder %s28, 1
      %p198 = scmp.ne.s32.totalorder %s193, %s195
      %p199 = scmp.eq.s32.totalorder %s28, 0
      %p200 = por %p198, %p199
      %p201 = scmp.ne.s32.totalorder %s193, %s195
      %p202 = scmp.eq.s32.totalorder %s33, 1
      %p203 = por %p201, %p202
      %p204 = scmp.ne.s32.totalorder %s195, %s196
      %p205 = scmp.eq.s32.totalorder %s33, 0
      %p206 = por %p204, %p205
      %p207 = scmp.ne.s32.totalorder %s195, %s196
      %p208 = scmp.eq.s32.totalorder %s34, 1
      %p209 = por %p207, %p208
      %p211 = scmp.ne.s32.totalorder %s196, %s210
      %p212 = scmp.eq.s32.totalorder %s34, 0
      %p213 = por %p211, %p212
      %s215 = sadd.s32 %s214, 1
      %p218 = scmp.eq.s32.totalorder %s28, 1
      %p219 = scmp.ne.s32.totalorder %s214, %s216
      %p220 = scmp.eq.s32.totalorder %s28, 0
      %p221 = por %p219, %p220
      %p222 = scmp.ne.s32.totalorder %s214, %s216
      %p223 = scmp.eq.s32.totalorder %s33, 1
      %p224 = por %p222, %p223
      %p225 = scmp.ne.s32.totalorder %s216, %s217
      %p226 = scmp.eq.s32.totalorder %s33, 0
      %p227 = por %p225, %p226
      %p228 = scmp.ne.s32.totalorder %s216, %s217
      %p229 = scmp.eq.s32.totalorder %s34, 1
      %p230 = por %p228, %p229
      %p232 = scmp.ne.s32.totalorder %s217, %s231
      %p233 = scmp.eq.s32.totalorder %s34, 0
      %p234 = por %p232, %p233
      %s236 = sadd.s32 %s235, 1
      %p239 = scmp.eq.s32.totalorder %s28, 1
      %p240 = scmp.ne.s32.totalorder %s235, %s237
      %p241 = scmp.eq.s32.totalorder %s28, 0
      %p242 = por %p240, %p241
      %p243 = scmp.ne.s32.totalorder %s235, %s237
      %p244 = scmp.eq.s32.totalorder %s33, 1
      %p245 = por %p243, %p244
      %p246 = scmp.ne.s32.totalorder %s237, %s238
      %p247 = scmp.eq.s32.totalorder %s33, 0
      %p248 = por %p246, %p247
      %p249 = scmp.ne.s32.totalorder %s237, %s238
      %p250 = scmp.eq.s32.totalorder %s34, 1
      %p251 = por %p249, %p250
      %p253 = scmp.ne.s32.totalorder %s238, %s252
      %p254 = scmp.eq.s32.totalorder %s34, 0
      %p255 = por %p253, %p254
      %s257 = sadd.s32 %s256, 1
      %p260 = scmp.eq.s32.totalorder %s28, 1
      %p261 = scmp.ne.s32.totalorder %s256, %s258
      %p262 = scmp.eq.s32.totalorder %s28, 0
      %p263 = por %p261, %p262
      %p264 = scmp.ne.s32.totalorder %s256, %s258
      %p265 = scmp.eq.s32.totalorder %s33, 1
      %p266 = por %p264, %p265
      %p267 = scmp.ne.s32.totalorder %s258, %s259
      %p268 = scmp.eq.s32.totalorder %s33, 0
      %p269 = por %p267, %p268
      %p270 = scmp.ne.s32.totalorder %s258, %s259
      %p271 = scmp.eq.s32.totalorder %s34, 1
      %p272 = por %p270, %p271
      %p274 = scmp.ne.s32.totalorder %s259, %s273
      %p275 = scmp.eq.s32.totalorder %s34, 0
      %p276 = por %p274, %p275
      %s278 = sadd.s32 %s277, 1
      %p281 = scmp.eq.s32.totalorder %s28, 1
      %p282 = scmp.ne.s32.totalorder %s277, %s279
      %p283 = scmp.eq.s32.totalorder %s28, 0
      %p284 = por %p282, %p283
      %p285 = scmp.ne.s32.totalorder %s277, %s279
      %p286 = scmp.eq.s32.totalorder %s33, 1
      %p287 = por %p285, %p286
      %p288 = scmp.ne.s32.totalorder %s279, %s280
      %p289 = scmp.eq.s32.totalorder %s33, 0
      %p290 = por %p288, %p289
      %p291 = scmp.ne.s32.totalorder %s279, %s280
      %p292 = scmp.eq.s32.totalorder %s34, 1
      %p293 = por %p291, %p292
      %p295 = scmp.ne.s32.totalorder %s280, %s294
      %p296 = scmp.eq.s32.totalorder %s34, 0
      %p297 = por %p295, %p296
      %s298 = ssub.s32 %s35, %s47
      %s299 = ssub.s32 %s36, %s43
      %s300 = sor.u32 %s298, %s299
      %p301 = scmp.eq.s32.totalorder %s300, 0
      %s303 = sadd.s32 %s302, 1
      %s304 = scalar_select %p301, %s302, %s303
      %p307 = pneg %p301
      %p308 = scmp.eq.s32.totalorder %s28, 1
      %p309 = por %p307, %p308
      %p310 = scmp.ne.s32.totalorder %s302, %s305
      %p311 = scmp.eq.s32.totalorder %s28, 0
      %p312 = por %p310, %p311
      %p313 = scmp.ne.s32.totalorder %s302, %s305
      %p314 = scmp.eq.s32.totalorder %s33, 1
      %p315 = por %p313, %p314
      %p316 = scmp.ne.s32.totalorder %s305, %s306
      %p317 = scmp.eq.s32.totalorder %s33, 0
      %p318 = por %p316, %p317
      %p319 = scmp.ne.s32.totalorder %s305, %s306
      %p320 = scmp.eq.s32.totalorder %s34, 1
      %p321 = por %p319, %p320
      %p323 = scmp.ne.s32.totalorder %s306, %s322
      %p324 = scmp.eq.s32.totalorder %s34, 0
      %p325 = por %p323, %p324
      %p326 = scmp.le.s32.totalorder 1, %s28
      %p327 = scmp.lt.s32.totalorder %s28, 3
      %p328 = pnand %p326, %p327
      %p329 = pneg %p328
      // Predicated region
      $region9: #{tpu_custom_call.1} parent=5 // pred_check
        _
      $region10: #{tpu_custom_call.1} parent=5 // pred_check_branch
        %331 = sbr.rel (%p328) target = $region12
      $region11: #{tpu_custom_call.1} parent=5 // pred_region
        %s332 = ssub.s32 %s28, 1
        // Predicated region
        $region13: #{tpu_custom_call.1} parent=11 // pred_check
          %p333 = pneg %p143
        $region14: #{tpu_custom_call.1} parent=11 // pred_check_branch
          %335 = sbr.rel (%p333) target = $region16
        $region15: #{tpu_custom_call.1} parent=11 // pred_region
          %s337 = ssub.s32 256, 256
          %338 = vsyncadd [#allocation12], %s337
          %s339 = sshll.u32 [#allocation11], 4
          %s340 = int_to_ptr.vmem [resolvable:$true] %s339
          %345 = dma.hbm_to_vmem [thread:$0]  %s3, 256, %s340, [#allocation12], 64, 64, 4
        $region16: #{tpu_custom_call.1} parent=11 // pred_fallthru
          _
        // Predicated region
        $region17: #{tpu_custom_call.1} parent=11 // pred_check
          %p346 = pneg %p164
        $region18: #{tpu_custom_call.1} parent=11 // pred_check_branch
          %348 = sbr.rel (%p346) target = $region20
        $region19: #{tpu_custom_call.1} parent=11 // pred_region
          _
        $region20: #{tpu_custom_call.1} parent=11 // pred_fallthru
          _
        // Predicated region
        $region21: #{tpu_custom_call.1} parent=11 // pred_check
          %p349 = pneg %p185
        $region22: #{tpu_custom_call.1} parent=11 // pred_check_branch
          %351 = sbr.rel (%p349) target = $region24
        $region23: #{tpu_custom_call.1} parent=11 // pred_region
          _
        $region24: #{tpu_custom_call.1} parent=11 // pred_fallthru
          _
        // Predicated region
        $region25: #{tpu_custom_call.1} parent=11 // pred_check
          %p352 = pneg %p206
        $region26: #{tpu_custom_call.1} parent=11 // pred_check_branch
          %354 = sbr.rel (%p352) target = $region28
        $region27: #{tpu_custom_call.1} parent=11 // pred_region
          _
        $region28: #{tpu_custom_call.1} parent=11 // pred_fallthru
          _
        // Predicated region
        $region29: #{tpu_custom_call.1} parent=11 // pred_check
          %p355 = pneg %p227
        $region30: #{tpu_custom_call.1} parent=11 // pred_check_branch
          %357 = sbr.rel (%p355) target = $region32
        $region31: #{tpu_custom_call.1} parent=11 // pred_region
          %s359 = ssub.s32 256, 256
          %360 = vsyncadd [#allocation12], %s359
          %s361 = sshll.u32 [#allocation13], 4
          %s362 = int_to_ptr.vmem [resolvable:$true] %s361
          %367 = dma.hbm_to_vmem [thread:$0]  %s7, 256, %s362, [#allocation12], 64, 64, 4
        $region32: #{tpu_custom_call.1} parent=11 // pred_fallthru
          _
        // Predicated region
        $region33: #{tpu_custom_call.1} parent=11 // pred_check
          %p368 = pneg %p248
        $region34: #{tpu_custom_call.1} parent=11 // pred_check_branch
          %370 = sbr.rel (%p368) target = $region36
        $region35: #{tpu_custom_call.1} parent=11 // pred_region
          %s372 = ssub.s32 16, 16
          %373 = vsyncadd [#allocation15], %s372
          %s375 = sshll.u32 [#allocation14], 4
          %s376 = int_to_ptr.vmem [resolvable:$true] %s375
          %378 = dma.hbm_to_vmem [thread:$0]  %s8, 16, %s376, [#allocation15]
        $region36: #{tpu_custom_call.1} parent=11 // pred_fallthru
          _
        // Predicated region
        $region37: #{tpu_custom_call.1} parent=11 // pred_check
          %p379 = pneg %p269
        $region38: #{tpu_custom_call.1} parent=11 // pred_check_branch
          %381 = sbr.rel (%p379) target = $region40
        $region39: #{tpu_custom_call.1} parent=11 // pred_region
          _
        $region40: #{tpu_custom_call.1} parent=11 // pred_fallthru
          _
        // Predicated region
        $region41: #{tpu_custom_call.1} parent=11 // pred_check
          %p382 = pneg %p290
        $region42: #{tpu_custom_call.1} parent=11 // pred_check_branch
          %384 = sbr.rel (%p382) target = $region44
        $region43: #{tpu_custom_call.1} parent=11 // pred_region
          _
        $region44: #{tpu_custom_call.1} parent=11 // pred_fallthru
          _
      $region12: #{tpu_custom_call.1} parent=5 // pred_fallthru
        _
      %p385 = scmp.lt.s32.totalorder %s28, 2
      // Predicated region
      $region45: #{tpu_custom_call.1} parent=5 // pred_check
        %p386 = pneg %p385
      $region46: #{tpu_custom_call.1} parent=5 // pred_check_branch
        %388 = sbr.rel (%p386) target = $region48
      $region47: #{tpu_custom_call.1} parent=5 // pred_region
        // Predicated region
        $region49: #{tpu_custom_call.1} parent=47 // pred_check
          %p389 = pneg %p60
        $region50: #{tpu_custom_call.1} parent=47 // pred_check_branch
          %391 = sbr.rel (%p389) target = $region52
        $region51: #{tpu_custom_call.1} parent=47 // pred_region
          %s392 = sand.u32 %s50, 1
          %s393 = scalar_lea.sflag [#allocation6], %s392
          %s394 = sand.u32 %s50, 1
          %s395 = smul.addr %s394, 4
          %s396 = scalar_lea.vmem [#allocation5], %s395
          %s398 = ssub.s32 64, 64
          %399 = vsyncadd %s393, %s398
          %s400 = smul.addr %s35, 64
          %s401 = scalar_lea.hbm %s0, %s400
          %s403 = sshll.u32 %s396, 4
          %s404 = int_to_ptr.vmem [resolvable:$true] %s403
          %406 = dma.hbm_to_vmem [thread:$0]  %s401, 64, %s404, %s393
        $region52: #{tpu_custom_call.1} parent=47 // pred_fallthru
          _
        // Predicated region
        $region53: #{tpu_custom_call.1} parent=47 // pred_check
          %p407 = pneg %p88
        $region54: #{tpu_custom_call.1} parent=47 // pred_check_branch
          %409 = sbr.rel (%p407) target = $region56
        $region55: #{tpu_custom_call.1} parent=47 // pred_region
          %s410 = sand.u32 %s28, 1
          %s411 = scalar_lea.sflag [#allocation9], %s410
          %s412 = sand.u32 %s78, 1
          %s413 = smul.addr %s412, 4
          %s414 = scalar_lea.vmem [#allocation8], %s413
          %s416 = ssub.s32 64, 64
          %417 = vsyncadd %s411, %s416
          %s418 = sadd.s32 %s36, %s35
          %s419 = smul.addr %s418, 64
          %s420 = scalar_lea.hbm %s1, %s419
          %s422 = sshll.u32 %s414, 4
          %s423 = int_to_ptr.vmem [resolvable:$true] %s422
          %425 = dma.hbm_to_vmem [thread:$0]  %s420, 64, %s423, %s411
        $region56: #{tpu_custom_call.1} parent=47 // pred_fallthru
          _
        // Predicated region
        $region57: #{tpu_custom_call.1} parent=47 // pred_check
          %p426 = pneg %p116
        $region58: #{tpu_custom_call.1} parent=47 // pred_check_branch
          %428 = sbr.rel (%p426) target = $region60
        $region59: #{tpu_custom_call.1} parent=47 // pred_region
          %s429 = sand.u32 %s28, 1
          %s430 = scalar_lea.sflag [#allocation9], %s429
          %s431 = sand.u32 %s106, 1
          %s432 = smul.addr %s431, 4
          %s433 = scalar_lea.vmem [#allocation10], %s432
          %s435 = ssub.s32 64, 64
          %436 = vsyncadd %s430, %s435
          %s437 = sadd.s32 %s36, %s35
          %s438 = smul.addr %s437, 64
          %s439 = scalar_lea.hbm %s2, %s438
          %s441 = sshll.u32 %s433, 4
          %s442 = int_to_ptr.vmem [resolvable:$true] %s441
          %444 = dma.hbm_to_vmem [thread:$0]  %s439, 64, %s442, %s430
        $region60: #{tpu_custom_call.1} parent=47 // pred_fallthru
          _
      $region48: #{tpu_custom_call.1} parent=5 // pred_fallthru
        _
      %p445 = scmp.le.s32.totalorder 1, %s28
      %p446 = scmp.lt.s32.totalorder %s28, 3
      %p447 = pnand %p445, %p446
      %p448 = pneg %p447
      // Predicated region
      $region61: #{tpu_custom_call.1} parent=5 // pred_check
        _
      $region62: #{tpu_custom_call.1} parent=5 // pred_check_branch
        %450 = sbr.rel (%p447) target = $region64
      $region63: #{tpu_custom_call.1} parent=5 // pred_region
        %s451 = ssub.s32 %s28, 1
        %s452 = sand.u32 %s53, 1
        %s453 = scalar_lea.sflag [#allocation6], %s452
        %s454 = sand.u32 %s53, 1
        %s455 = smul.addr %s454, 4
        %s456 = scalar_lea.vmem [#allocation5], %s455
        // Predicated region
        $region65: #{tpu_custom_call.1} parent=63 // pred_check
          %p457 = pneg %p66
        $region66: #{tpu_custom_call.1} parent=63 // pred_check_branch
          %459 = sbr.rel (%p457) target = $region68
        $region67: #{tpu_custom_call.1} parent=63 // pred_region
          %460 = dma.done %s453, 64
        $region68: #{tpu_custom_call.1} parent=63 // pred_fallthru
          _
        %s461 = sand.u32 %s33, 1
        %s462 = scalar_lea.sflag [#allocation9], %s461
        %s463 = sand.u32 %s81, 1
        %s464 = smul.addr %s463, 4
        %s465 = scalar_lea.vmem [#allocation8], %s464
        // Predicated region
        $region69: #{tpu_custom_call.1} parent=63 // pred_check
          %p466 = pneg %p94
        $region70: #{tpu_custom_call.1} parent=63 // pred_check_branch
          %468 = sbr.rel (%p466) target = $region72
        $region71: #{tpu_custom_call.1} parent=63 // pred_region
          %469 = dma.done %s462, 64
        $region72: #{tpu_custom_call.1} parent=63 // pred_fallthru
          _
        %s470 = sand.u32 %s33, 1
        %s471 = scalar_lea.sflag [#allocation9], %s470
        %s472 = sand.u32 %s109, 1
        %s473 = smul.addr %s472, 4
        %s474 = scalar_lea.vmem [#allocation10], %s473
        // Predicated region
        $region73: #{tpu_custom_call.1} parent=63 // pred_check
          %p475 = pneg %p122
        $region74: #{tpu_custom_call.1} parent=63 // pred_check_branch
          %477 = sbr.rel (%p475) target = $region76
        $region75: #{tpu_custom_call.1} parent=63 // pred_region
          %478 = dma.done %s471, 64
        $region76: #{tpu_custom_call.1} parent=63 // pred_fallthru
          _
        // Predicated region
        $region77: #{tpu_custom_call.1} parent=63 // pred_check
          %p479 = pneg %p143
        $region78: #{tpu_custom_call.1} parent=63 // pred_check_branch
          %481 = sbr.rel (%p479) target = $region80
        $region79: #{tpu_custom_call.1} parent=63 // pred_region
          %482 = dma.done [#allocation12], 256
        $region80: #{tpu_custom_call.1} parent=63 // pred_fallthru
          _
        // Predicated region
        $region81: #{tpu_custom_call.1} parent=63 // pred_check
          %p483 = pneg %p227
        $region82: #{tpu_custom_call.1} parent=63 // pred_check_branch
          %485 = sbr.rel (%p483) target = $region84
        $region83: #{tpu_custom_call.1} parent=63 // pred_region
          %486 = dma.done [#allocation12], 256
        $region84: #{tpu_custom_call.1} parent=63 // pred_fallthru
          _
        // Predicated region
        $region85: #{tpu_custom_call.1} parent=63 // pred_check
          %p487 = pneg %p248
        $region86: #{tpu_custom_call.1} parent=63 // pred_check_branch
          %489 = sbr.rel (%p487) target = $region88
        $region87: #{tpu_custom_call.1} parent=63 // pred_region
          %490 = dma.done [#allocation15], 16
        $region88: #{tpu_custom_call.1} parent=63 // pred_fallthru
          _
        %s491 = sand.u32 %s53, 1
        %s492 = scalar_lea.sflag [#allocation6], %s491
        %s493 = sand.u32 %s53, 1
        %s494 = smul.addr %s493, 4
        %s495 = scalar_lea.vmem [#allocation5], %s494
        %p496 = pneg %p66
        %p497 = pneg %p63
        %s498 = sand.u32 %s33, 1
        %s499 = scalar_lea.sflag [#allocation9], %s498
        %s500 = sand.u32 %s81, 1
        %s501 = smul.addr %s500, 4
        %s502 = scalar_lea.vmem [#allocation8], %s501
        %p503 = pneg %p94
        %p504 = pneg %p91
        %s505 = sand.u32 %s33, 1
        %s506 = scalar_lea.sflag [#allocation9], %s505
        %s507 = sand.u32 %s109, 1
        %s508 = smul.addr %s507, 4
        %s509 = scalar_lea.vmem [#allocation10], %s508
        %p510 = pneg %p122
        %p511 = pneg %p119
        %p512 = pneg %p143
        %p513 = pneg %p140
        %p514 = pneg %p164
        %p515 = pneg %p161
        %p516 = pneg %p185
        %p517 = pneg %p182
        %p518 = pneg %p206
        %p519 = pneg %p203
        %p520 = pneg %p227
        %p521 = pneg %p224
        %p522 = pneg %p248
        %p523 = pneg %p245
        %p524 = pneg %p269
        %p525 = pneg %p266
        %p526 = pneg %p290
        %p527 = pneg %p287
        %p528 = pneg %p318
        %p529 = pneg %p315
        %s530 = sand.u32 %s305, 1
        %s531 = scalar_lea.sflag [#allocation7], %s530
        %s532 = sand.u32 %s305, 1
        %s533 = smul.addr %s532, 8
        %s534 = scalar_lea.vmem [#allocation16], %s533
        %p536 = scmp.eq.s32.totalorder %s38, 0
        // Predicated region
        $region89: #{tpu_custom_call.1} parent=63 // pred_check
          %p537 = pneg %p536
        $region90: #{tpu_custom_call.1} parent=63 // pred_check_branch
          %539 = sbr.rel (%p537) target = $region92
        $region91: #{tpu_custom_call.1} parent=63 // pred_region
          %v540 = vld [vmem:[%s456] sm:$0xf]
          %v541 = vld [vmem:[%s5] sm:$0xf]
          %v542 = vld [vmem:[%s5 + $0x4] sm:$0xf]
          %v543 = vld [vmem:[%s5 + $0x8] sm:$0xf]
          %v544 = vld [vmem:[%s5 + $0xc] sm:$0xf]
          %v545 = vld [vmem:[%s6] sm:$0x1]
          %v547 = vlaneseq
          %v548 = vshrl.u32 %v547, 7
          %v549 = vsub.s32 0, %v548
          %v550 = vrot.slane %v545, %v549
          %v556 = vunpack.c.l.b16 %v541
          %v557 = vunpack.c.l.b16 %v542
          %v558 = vunpack.c.l.b16 %v543
          %v559 = vunpack.c.l.b16 %v544
          %v560 = vpack.c.b16 %v557, %v556
          %v561 = vpack.c.b16 %v559, %v558
          %vm564 = vcmask 261120
          %v566 = vsel %vm564, %v540, 0
          %568 = vmatprep.subr.bf16.mxu0 0
          %569 = vmatpush1.bf16.msra.mxu0 %v560
          %570 = vmatprep.subr.bf16.mxu0 0
          %571 = vmatpush1.bf16.msra.mxu0 %v561
          %572 = vmatprep.subr.bf16.mxu0 0
          %573 = vmatpush1.bf16.msra.mxu0 0
          %574 = vmatprep.subr.bf16.mxu0 0
          %575 = vmatpush1.bf16.msra.mxu0 0
          %576 = vmatprep.subr.bf16.mxu0 0
          %577 = vmatpush1.bf16.msra.mxu0 0
          %578 = vmatprep.subr.bf16.mxu0 0
          %579 = vmatpush1.bf16.msra.mxu0 0
          %580 = vmatprep.subr.bf16.mxu0 0
          %581 = vmatpush1.bf16.msra.mxu0 0
          %582 = vmatprep.subr.bf16.mxu0 0
          %583 = vmatpush1.bf16.msra.mxu0 0
          %584 = vmatprep.subr.bf16.mxu0 0
          %585 = vmatpush1.bf16.msra.mxu0 0
          %586 = vmatprep.subr.bf16.mxu0 0
          %587 = vmatpush1.bf16.msra.mxu0 0
          %588 = vmatprep.subr.bf16.mxu0 0
          %589 = vmatpush1.bf16.msra.mxu0 0
          %590 = vmatprep.subr.bf16.mxu0 0
          %591 = vmatpush1.bf16.msra.mxu0 0
          %592 = vmatprep.subr.bf16.mxu0 0
          %593 = vmatpush1.bf16.msra.mxu0 0
          %594 = vmatprep.subr.bf16.mxu0 0
          %595 = vmatpush1.bf16.msra.mxu0 0
          %596 = vmatprep.subr.bf16.mxu0 0
          %597 = vmatpush1.bf16.msra.mxu0 0
          %598 = vmatprep.subr.bf16.mxu0 0
          %599 = vmatpush1.bf16.msra.mxu0 0
          %600 = vmatprep.mubr.bf16.mxu0 0
          %601 = vmatmul.mubr.bf16.gmra.mrb[0].mxu0 %v566
          %v602 = vpop.f32.mrb[0].mxu0
          %v603 = vadd.f32 %v550, %v602
          %v604 = vpop.f32.mrb[0].mxu0
          %v605 = vpop.f32.mrb[0].mxu0
          %v606 = vpop.f32.mrb[0].mxu0
          %607 = vdwg.mxu0
          %v608 = vld [vmem:[#allocation13] sm:$0xf]
          %v609 = vld [vmem:[#allocation13 + $0x4] sm:$0xf]
          %v610 = vld [vmem:[#allocation13 + $0x8] sm:$0xf]
          %v611 = vld [vmem:[#allocation13 + $0xc] sm:$0xf]
          %v612 = vld [vmem:[#allocation14] sm:$0x1]
          %v614 = vlaneseq
          %v615 = vshrl.u32 %v614, 7
          %v616 = vsub.s32 0, %v615
          %v617 = vrot.slane %v612, %v616
          %v623 = vunpack.c.l.b16 %v608
          %v624 = vunpack.c.l.b16 %v609
          %v625 = vunpack.c.l.b16 %v610
          %v626 = vunpack.c.l.b16 %v611
          %v627 = vpack.c.b16 %v624, %v623
          %v628 = vpack.c.b16 %v626, %v625
          %631 = vmatprep.subr.bf16.mxu0 0
          %632 = vmatpush1.bf16.msra.mxu0 %v627
          %633 = vmatprep.subr.bf16.mxu0 0
          %634 = vmatpush1.bf16.msra.mxu0 %v628
          %635 = vmatprep.subr.bf16.mxu0 0
          %636 = vmatpush1.bf16.msra.mxu0 0
          %637 = vmatprep.subr.bf16.mxu0 0
          %638 = vmatpush1.bf16.msra.mxu0 0
          %639 = vmatprep.subr.bf16.mxu0 0
          %640 = vmatpush1.bf16.msra.mxu0 0
          %641 = vmatprep.subr.bf16.mxu0 0
          %642 = vmatpush1.bf16.msra.mxu0 0
          %643 = vmatprep.subr.bf16.mxu0 0
          %644 = vmatpush1.bf16.msra.mxu0 0
          %645 = vmatprep.subr.bf16.mxu0 0
          %646 = vmatpush1.bf16.msra.mxu0 0
          %647 = vmatprep.subr.bf16.mxu0 0
          %648 = vmatpush1.bf16.msra.mxu0 0
          %649 = vmatprep.subr.bf16.mxu0 0
          %650 = vmatpush1.bf16.msra.mxu0 0
          %651 = vmatprep.subr.bf16.mxu0 0
          %652 = vmatpush1.bf16.msra.mxu0 0
          %653 = vmatprep.subr.bf16.mxu0 0
          %654 = vmatpush1.bf16.msra.mxu0 0
          %655 = vmatprep.subr.bf16.mxu0 0
          %656 = vmatpush1.bf16.msra.mxu0 0
          %657 = vmatprep.subr.bf16.mxu0 0
          %658 = vmatpush1.bf16.msra.mxu0 0
          %659 = vmatprep.subr.bf16.mxu0 0
          %660 = vmatpush1.bf16.msra.mxu0 0
          %661 = vmatprep.subr.bf16.mxu0 0
          %662 = vmatpush1.bf16.msra.mxu0 0
          %663 = vmatprep.mubr.bf16.mxu0 0
          %664 = vmatmul.mubr.bf16.gmra.mrb[0].mxu0 %v566
          %v665 = vpop.f32.mrb[0].mxu0
          %v666 = vadd.f32 %v617, %v665
          %v667 = vpop.f32.mrb[0].mxu0
          %v668 = vpop.f32.mrb[0].mxu0
          %v669 = vpop.f32.mrb[0].mxu0
          %670 = vdwg.mxu0
          %v671 = vpack.c.bf16 %v603, %v603
          %vm672 = vcmask 257024
          %673 = vst.msk [vmem:[#allocation2] sm:$0xf] %vm672, %v671
          %v674 = vpack.c.bf16 %v666, %v666
          %675 = vst.msk [vmem:[#allocation3] sm:$0xf] %vm672, %v674
        $region92: #{tpu_custom_call.1} parent=63 // pred_fallthru
          _
        %v676 = vld [vmem:[%s465] sm:$0xf]
        %v677 = vld [vmem:[#allocation11] sm:$0xf]
        %v678 = vld [vmem:[#allocation11 + $0x4] sm:$0xf]
        %v679 = vld [vmem:[#allocation11 + $0x8] sm:$0xf]
        %v680 = vld [vmem:[#allocation11 + $0xc] sm:$0xf]
        %v681 = vld [vmem:[%s4] sm:$0x1]
        %v683 = vlaneseq
        %v684 = vshrl.u32 %v683, 7
        %v685 = vsub.s32 0, %v684
        %v686 = vrot.slane %v681, %v685
        %v692 = vunpack.c.l.b16 %v677
        %v693 = vunpack.c.l.b16 %v678
        %v694 = vunpack.c.l.b16 %v679
        %v695 = vunpack.c.l.b16 %v680
        %v696 = vpack.c.b16 %v693, %v692
        %v697 = vpack.c.b16 %v695, %v694
        %vm700 = vcmask 261120
        %v702 = vsel %vm700, %v676, 0
        %704 = vmatprep.subr.bf16.mxu0 0
        %705 = vmatpush1.bf16.msra.mxu0 %v696
        %706 = vmatprep.subr.bf16.mxu0 0
        %707 = vmatpush1.bf16.msra.mxu0 %v697
        %708 = vmatprep.subr.bf16.mxu0 0
        %709 = vmatpush1.bf16.msra.mxu0 0
        %710 = vmatprep.subr.bf16.mxu0 0
        %711 = vmatpush1.bf16.msra.mxu0 0
        %712 = vmatprep.subr.bf16.mxu0 0
        %713 = vmatpush1.bf16.msra.mxu0 0
        %714 = vmatprep.subr.bf16.mxu0 0
        %715 = vmatpush1.bf16.msra.mxu0 0
        %716 = vmatprep.subr.bf16.mxu0 0
        %717 = vmatpush1.bf16.msra.mxu0 0
        %718 = vmatprep.subr.bf16.mxu0 0
        %719 = vmatpush1.bf16.msra.mxu0 0
        %720 = vmatprep.subr.bf16.mxu0 0
        %721 = vmatpush1.bf16.msra.mxu0 0
        %722 = vmatprep.subr.bf16.mxu0 0
        %723 = vmatpush1.bf16.msra.mxu0 0
        %724 = vmatprep.subr.bf16.mxu0 0
        %725 = vmatpush1.bf16.msra.mxu0 0
        %726 = vmatprep.subr.bf16.mxu0 0
        %727 = vmatpush1.bf16.msra.mxu0 0
        %728 = vmatprep.subr.bf16.mxu0 0
        %729 = vmatpush1.bf16.msra.mxu0 0
        %730 = vmatprep.subr.bf16.mxu0 0
        %731 = vmatpush1.bf16.msra.mxu0 0
        %732 = vmatprep.subr.bf16.mxu0 0
        %733 = vmatpush1.bf16.msra.mxu0 0
        %734 = vmatprep.subr.bf16.mxu0 0
        %735 = vmatpush1.bf16.msra.mxu0 0
        %736 = vmatprep.mubr.bf16.mxu0 0
        %737 = vmatmul.mubr.bf16.gmra.mrb[0].mxu0 %v702
        %v738 = vpop.f32.mrb[0].mxu0
        %v739 = vadd.f32 %v686, %v738
        %v740 = vpop.f32.mrb[0].mxu0
        %v741 = vpop.f32.mrb[0].mxu0
        %v742 = vpop.f32.mrb[0].mxu0
        %743 = vdwg.mxu0
        %v744 = vpack.c.bf16 %v739, %v739
        %v745 = vld [vmem:[%s474] sm:$0xf]
        %v746 = vunpack.c.l.bf16 %v745
        %v747 = vld [vmem:[#allocation2] sm:$0xf]
        %v748 = vld [vmem:[#allocation3] sm:$0xf]
        %vm749 = vcmask 64512
        %v751 = vsel %vm749, %v744, 0
        %v754 = vsel %vm749, %v747, 0
        %756 = vmatprep.subr.bf16.mxu0 0
        %757 = vmatpush1.bf16.xpose.msra.mxu0 %v754
        %758 = vmatprep.subr.bf16.mxu0 0
        %759 = vmatpush1.bf16.xpose.msra.mxu0 0
        %760 = vmatprep.subr.bf16.mxu0 0
        %761 = vmatpush1.bf16.xpose.msra.mxu0 0
        %762 = vmatprep.subr.bf16.mxu0 0
        %763 = vmatpush1.bf16.xpose.msra.mxu0 0
        %764 = vmatprep.subr.bf16.mxu0 0
        %765 = vmatpush1.bf16.xpose.msra.mxu0 0
        %766 = vmatprep.subr.bf16.mxu0 0
        %767 = vmatpush1.bf16.xpose.msra.mxu0 0
        %768 = vmatprep.subr.bf16.mxu0 0
        %769 = vmatpush1.bf16.xpose.msra.mxu0 0
        %770 = vmatprep.subr.bf16.mxu0 0
        %771 = vmatpush1.bf16.xpose.msra.mxu0 0
        %772 = vmatprep.subr.bf16.mxu0 0
        %773 = vmatpush1.bf16.xpose.msra.mxu0 0
        %774 = vmatprep.subr.bf16.mxu0 0
        %775 = vmatpush1.bf16.xpose.msra.mxu0 0
        %776 = vmatprep.subr.bf16.mxu0 0
        %777 = vmatpush1.bf16.xpose.msra.mxu0 0
        %778 = vmatprep.subr.bf16.mxu0 0
        %779 = vmatpush1.bf16.xpose.msra.mxu0 0
        %780 = vmatprep.subr.bf16.mxu0 0
        %781 = vmatpush1.bf16.xpose.msra.mxu0 0
        %782 = vmatprep.subr.bf16.mxu0 0
        %783 = vmatpush1.bf16.xpose.msra.mxu0 0
        %784 = vmatprep.subr.bf16.mxu0 0
        %785 = vmatpush1.bf16.xpose.msra.mxu0 0
        %786 = vmatprep.subr.bf16.mxu0 0
        %787 = vmatpush1.bf16.xpose.msra.mxu0 0
        %788 = vmatprep.mubr.bf16.mxu0 0
        %789 = vmatmul.mubr.bf16.gmra.mrb[0].mxu0 %v751
        %v790 = vpop.f32.mrb[0].mxu0
        %v791 = vadd.f32 %v746, %v790
        %v792 = vpop.f32.mrb[0].mxu0
        %v793 = vpop.f32.mrb[0].mxu0
        %v794 = vpop.f32.mrb[0].mxu0
        %795 = vdwg.mxu0
        %v796 = vsel %vm749, %v791, -inf
        %797 = vmax.xlane.f32.xlu0 %v796
        %v798 = vpop.xlane.xlu0 %797
        %v799 = vsub.f32 %v791, %v798
        %v800 = vmul.f32 %v799, 1.442695
        %v801 = vpow.pop %v800
        %v802 = vsel %vm749, %v801, 0.0
        %803 = vadd.xlane.f32.xlu0 %v802
        %v804 = vpop.xlane.xlu0 %803
        %v805 = vrcp.pop %v804
        %v806 = vmul.f32 %v801, %v805
        %v807 = vpack.c.bf16 %v806, %v806
        %v809 = vsel %vm749, %v807, 0
        %vm811 = vcmask 1043456
        %v813 = vsel %vm811, %v748, 0
        %815 = vmatprep.subr.bf16.mxu0 0
        %816 = vmatpush1.bf16.msra.mxu0 %v813
        %817 = vmatprep.subr.bf16.mxu0 0
        %818 = vmatpush1.bf16.msra.mxu0 0
        %819 = vmatprep.subr.bf16.mxu0 0
        %820 = vmatpush1.bf16.msra.mxu0 0
        %821 = vmatprep.subr.bf16.mxu0 0
        %822 = vmatpush1.bf16.msra.mxu0 0
        %823 = vmatprep.subr.bf16.mxu0 0
        %824 = vmatpush1.bf16.msra.mxu0 0
        %825 = vmatprep.subr.bf16.mxu0 0
        %826 = vmatpush1.bf16.msra.mxu0 0
        %827 = vmatprep.subr.bf16.mxu0 0
        %828 = vmatpush1.bf16.msra.mxu0 0
        %829 = vmatprep.subr.bf16.mxu0 0
        %830 = vmatpush1.bf16.msra.mxu0 0
        %831 = vmatprep.subr.bf16.mxu0 0
        %832 = vmatpush1.bf16.msra.mxu0 0
        %833 = vmatprep.subr.bf16.mxu0 0
        %834 = vmatpush1.bf16.msra.mxu0 0
        %835 = vmatprep.subr.bf16.mxu0 0
        %836 = vmatpush1.bf16.msra.mxu0 0
        %837 = vmatprep.subr.bf16.mxu0 0
        %838 = vmatpush1.bf16.msra.mxu0 0
        %839 = vmatprep.subr.bf16.mxu0 0
        %840 = vmatpush1.bf16.msra.mxu0 0
        %841 = vmatprep.subr.bf16.mxu0 0
        %842 = vmatpush1.bf16.msra.mxu0 0
        %843 = vmatprep.subr.bf16.mxu0 0
        %844 = vmatpush1.bf16.msra.mxu0 0
        %845 = vmatprep.subr.bf16.mxu0 0
        %846 = vmatpush1.bf16.msra.mxu0 0
        %847 = vmatprep.mubr.bf16.mxu0 0
        %848 = vmatmul.mubr.bf16.gmra.mrb[0].mxu0 %v809
        %v849 = vpop.f32.mrb[0].mxu0
        %v850 = vadd.f32 0.0, %v849
        %v851 = vpop.f32.mrb[0].mxu0
        %v852 = vpop.f32.mrb[0].mxu0
        %v853 = vpop.f32.mrb[0].mxu0
        %854 = vdwg.mxu0
        %v855 = vpack.c.bf16 %v850, %v850
        %vm856 = vcmask 60416
        %857 = vst.msk [vmem:[#allocation4] sm:$0xf] %vm856, %v855
        %v858 = vld [vmem:[#allocation2] sm:$0xf]
        %v859 = vld [vmem:[#allocation3] sm:$0xf]
        %861 = vrot.lane.b32.xlu0 %v744, 120
        %v862 = vpop.permute.xlu0 %861
        %v864 = vunpack.c.l.b16 %v858
        %v865 = vpack.c.b16 %v864, %v864
        %866 = vrot.lane.b32.xlu0 %v865, 120
        %v867 = vpop.permute.xlu0 %866
        %v869 = vsel %vm749, %v862, 0
        %v872 = vsel %vm749, %v867, 0
        %874 = vmatprep.subr.bf16.mxu0 0
        %875 = vmatpush1.bf16.xpose.msra.mxu0 %v872
        %876 = vmatprep.subr.bf16.mxu0 0
        %877 = vmatpush1.bf16.xpose.msra.mxu0 0
        %878 = vmatprep.subr.bf16.mxu0 0
        %879 = vmatpush1.bf16.xpose.msra.mxu0 0
        %880 = vmatprep.subr.bf16.mxu0 0
        %881 = vmatpush1.bf16.xpose.msra.mxu0 0
        %882 = vmatprep.subr.bf16.mxu0 0
        %883 = vmatpush1.bf16.xpose.msra.mxu0 0
        %884 = vmatprep.subr.bf16.mxu0 0
        %885 = vmatpush1.bf16.xpose.msra.mxu0 0
        %886 = vmatprep.subr.bf16.mxu0 0
        %887 = vmatpush1.bf16.xpose.msra.mxu0 0
        %888 = vmatprep.subr.bf16.mxu0 0
        %889 = vmatpush1.bf16.xpose.msra.mxu0 0
        %890 = vmatprep.subr.bf16.mxu0 0
        %891 = vmatpush1.bf16.xpose.msra.mxu0 0
        %892 = vmatprep.subr.bf16.mxu0 0
        %893 = vmatpush1.bf16.xpose.msra.mxu0 0
        %894 = vmatprep.subr.bf16.mxu0 0
        %895 = vmatpush1.bf16.xpose.msra.mxu0 0
        %896 = vmatprep.subr.bf16.mxu0 0
        %897 = vmatpush1.bf16.xpose.msra.mxu0 0
        %898 = vmatprep.subr.bf16.mxu0 0
        %899 = vmatpush1.bf16.xpose.msra.mxu0 0
        %900 = vmatprep.subr.bf16.mxu0 0
        %901 = vmatpush1.bf16.xpose.msra.mxu0 0
        %902 = vmatprep.subr.bf16.mxu0 0
        %903 = vmatpush1.bf16.xpose.msra.mxu0 0
        %904 = vmatprep.subr.bf16.mxu0 0
        %905 = vmatpush1.bf16.xpose.msra.mxu0 0
        %906 = vmatprep.mubr.bf16.mxu0 0
        %907 = vmatmul.mubr.bf16.gmra.mrb[0].mxu0 %v869
        %v908 = vpop.f32.mrb[0].mxu0
        %v909 = vadd.f32 %v746, %v908
        %v910 = vpop.f32.mrb[0].mxu0
        %v911 = vpop.f32.mrb[0].mxu0
        %v912 = vpop.f32.mrb[0].mxu0
        %913 = vdwg.mxu0
        %v914 = vsel %vm749, %v909, -inf
        %915 = vmax.xlane.f32.xlu0 %v914
        %v916 = vpop.xlane.xlu0 %915
        %v917 = vsub.f32 %v909, %v916
        %v918 = vmul.f32 %v917, 1.442695
        %v919 = vpow.pop %v918
        %v920 = vsel %vm749, %v919, 0.0
        %921 = vadd.xlane.f32.xlu0 %v920
        %v922 = vpop.xlane.xlu0 %921
        %v923 = vrcp.pop %v922
        %v924 = vmul.f32 %v919, %v923
        %v925 = vpack.c.bf16 %v924, %v924
        %v927 = vunpack.c.l.b16 %v859
        %v928 = vpack.c.b16 %v927, %v927
        %929 = vrot.lane.b32.xlu0 %v928, 120
        %v930 = vpop.permute.xlu0 %929
        %v932 = vsel %vm749, %v925, 0
        %v935 = vsel %vm811, %v930, 0
        %937 = vmatprep.subr.bf16.mxu0 0
        %938 = vmatpush1.bf16.msra.mxu0 %v935
        %939 = vmatprep.subr.bf16.mxu0 0
        %940 = vmatpush1.bf16.msra.mxu0 0
        %941 = vmatprep.subr.bf16.mxu0 0
        %942 = vmatpush1.bf16.msra.mxu0 0
        %943 = vmatprep.subr.bf16.mxu0 0
        %944 = vmatpush1.bf16.msra.mxu0 0
        %945 = vmatprep.subr.bf16.mxu0 0
        %946 = vmatpush1.bf16.msra.mxu0 0
        %947 = vmatprep.subr.bf16.mxu0 0
        %948 = vmatpush1.bf16.msra.mxu0 0
        %949 = vmatprep.subr.bf16.mxu0 0
        %950 = vmatpush1.bf16.msra.mxu0 0
        %951 = vmatprep.subr.bf16.mxu0 0
        %952 = vmatpush1.bf16.msra.mxu0 0
        %953 = vmatprep.subr.bf16.mxu0 0
        %954 = vmatpush1.bf16.msra.mxu0 0
        %955 = vmatprep.subr.bf16.mxu0 0
        %956 = vmatpush1.bf16.msra.mxu0 0
        %957 = vmatprep.subr.bf16.mxu0 0
        %958 = vmatpush1.bf16.msra.mxu0 0
        %959 = vmatprep.subr.bf16.mxu0 0
        %960 = vmatpush1.bf16.msra.mxu0 0
        %961 = vmatprep.subr.bf16.mxu0 0
        %962 = vmatpush1.bf16.msra.mxu0 0
        %963 = vmatprep.subr.bf16.mxu0 0
        %964 = vmatpush1.bf16.msra.mxu0 0
        %965 = vmatprep.subr.bf16.mxu0 0
        %966 = vmatpush1.bf16.msra.mxu0 0
        %967 = vmatprep.subr.bf16.mxu0 0
        %968 = vmatpush1.bf16.msra.mxu0 0
        %969 = vmatprep.mubr.bf16.mxu0 0
        %970 = vmatmul.mubr.bf16.gmra.mrb[0].mxu0 %v932
        %v971 = vpop.f32.mrb[0].mxu0
        %v972 = vadd.f32 0.0, %v971
        %v973 = vpop.f32.mrb[0].mxu0
        %v974 = vpop.f32.mrb[0].mxu0
        %v975 = vpop.f32.mrb[0].mxu0
        %976 = vdwg.mxu0
        %v977 = vpack.c.bf16 %v972, %v972
        %v979 = vunpack.c.l.b16 %v977
        %v980 = vpack.c.b16 %v979, %v979
        %981 = vrot.lane.b32.xlu0 %v980, 8
        %v982 = vpop.permute.xlu0 %981
        %vm984 = vcmask 126016
        %985 = vst.msk [vmem:[#allocation4] sm:$0xf] %vm984, %v982
        %v986 = vld [vmem:[#allocation2] sm:$0xf]
        %v987 = vld [vmem:[#allocation3] sm:$0xf]
        %988 = vrot.lane.b32.xlu0 %v744, 112
        %v989 = vpop.permute.xlu0 %988
        %v991 = vunpack.c.l.b16 %v986
        %v992 = vpack.c.b16 %v991, %v991
        %993 = vrot.lane.b32.xlu0 %v992, 112
        %v994 = vpop.permute.xlu0 %993
        %v996 = vsel %vm749, %v989, 0
        %v999 = vsel %vm749, %v994, 0
        %1001 = vmatprep.subr.bf16.mxu0 0
        %1002 = vmatpush1.bf16.xpose.msra.mxu0 %v999
        %1003 = vmatprep.subr.bf16.mxu0 0
        %1004 = vmatpush1.bf16.xpose.msra.mxu0 0
        %1005 = vmatprep.subr.bf16.mxu0 0
        %1006 = vmatpush1.bf16.xpose.msra.mxu0 0
        %1007 = vmatprep.subr.bf16.mxu0 0
        %1008 = vmatpush1.bf16.xpose.msra.mxu0 0
        %1009 = vmatprep.subr.bf16.mxu0 0
        %1010 = vmatpush1.bf16.xpose.msra.mxu0 0
        %1011 = vmatprep.subr.bf16.mxu0 0
        %1012 = vmatpush1.bf16.xpose.msra.mxu0 0
        %1013 = vmatprep.subr.bf16.mxu0 0
        %1014 = vmatpush1.bf16.xpose.msra.mxu0 0
        %1015 = vmatprep.subr.bf16.mxu0 0
        %1016 = vmatpush1.bf16.xpose.msra.mxu0 0
        %1017 = vmatprep.subr.bf16.mxu0 0
        %1018 = vmatpush1.bf16.xpose.msra.mxu0 0
        %1019 = vmatprep.subr.bf16.mxu0 0
        %1020 = vmatpush1.bf16.xpose.msra.mxu0 0
        %1021 = vmatprep.subr.bf16.mxu0 0
        %1022 = vmatpush1.bf16.xpose.msra.mxu0 0
        %1023 = vmatprep.subr.bf16.mxu0 0
        %1024 = vmatpush1.bf16.xpose.msra.mxu0 0
        %1025 = vmatprep.subr.bf16.mxu0 0
        %1026 = vmatpush1.bf16.xpose.msra.mxu0 0
        %1027 = vmatprep.subr.bf16.mxu0 0
        %1028 = vmatpush1.bf16.xpose.msra.mxu0 0
        %1029 = vmatprep.subr.bf16.mxu0 0
        %1030 = vmatpush1.bf16.xpose.msra.mxu0 0
        %1031 = vmatprep.subr.bf16.mxu0 0
        %1032 = vmatpush1.bf16.xpose.msra.mxu0 0
        %1033 = vmatprep.mubr.bf16.mxu0 0
        %1034 = vmatmul.mubr.bf16.gmra.mrb[0].mxu0 %v996
        %v1035 = vpop.f32.mrb[0].mxu0
        %v1036 = vadd.f32 %v746, %v1035
        %v1037 = vpop.f32.mrb[0].mxu0
        %v1038 = vpop.f32.mrb[0].mxu0
        %v1039 = vpop.f32.mrb[0].mxu0
        %1040 = vdwg.mxu0
        %v1041 = vsel %vm749, %v1036, -inf
        %1042 = vmax.xlane.f32.xlu0 %v1041
        %v1043 = vpop.xlane.xlu0 %1042
        %v1044 = vsub.f32 %v1036, %v1043
        %v1045 = vmul.f32 %v1044, 1.442695
        %v1046 = vpow.pop %v1045
        %v1047 = vsel %vm749, %v1046, 0.0
        %1048 = vadd.xlane.f32.xlu0 %v1047
        %v1049 = vpop.xlane.xlu0 %1048
        %v1050 = vrcp.pop %v1049
        %v1051 = vmul.f32 %v1046, %v1050
        %v1052 = vpack.c.bf16 %v1051, %v1051
        %v1054 = vunpack.c.l.b16 %v987
        %v1055 = vpack.c.b16 %v1054, %v1054
        %1056 = vrot.lane.b32.xlu0 %v1055, 112
        %v1057 = vpop.permute.xlu0 %1056
        %v1059 = vsel %vm749, %v1052, 0
        %v1062 = vsel %vm811, %v1057, 0
        %1064 = vmatprep.subr.bf16.mxu0 0
        %1065 = vmatpush1.bf16.msra.mxu0 %v1062
        %1066 = vmatprep.subr.bf16.mxu0 0
        %1067 = vmatpush1.bf16.msra.mxu0 0
        %1068 = vmatprep.subr.bf16.mxu0 0
        %1069 = vmatpush1.bf16.msra.mxu0 0
        %1070 = vmatprep.subr.bf16.mxu0 0
        %1071 = vmatpush1.bf16.msra.mxu0 0
        %1072 = vmatprep.subr.bf16.mxu0 0
        %1073 = vmatpush1.bf16.msra.mxu0 0
        %1074 = vmatprep.subr.bf16.mxu0 0
        %1075 = vmatpush1.bf16.msra.mxu0 0
        %1076 = vmatprep.subr.bf16.mxu0 0
        %1077 = vmatpush1.bf16.msra.mxu0 0
        %1078 = vmatprep.subr.bf16.mxu0 0
        %1079 = vmatpush1.bf16.msra.mxu0 0
        %1080 = vmatprep.subr.bf16.mxu0 0
        %1081 = vmatpush1.bf16.msra.mxu0 0
        %1082 = vmatprep.subr.bf16.mxu0 0
        %1083 = vmatpush1.bf16.msra.mxu0 0
        %1084 = vmatprep.subr.bf16.mxu0 0
        %1085 = vmatpush1.bf16.msra.mxu0 0
        %1086 = vmatprep.subr.bf16.mxu0 0
        %1087 = vmatpush1.bf16.msra.mxu0 0
        %1088 = vmatprep.subr.bf16.mxu0 0
        %1089 = vmatpush1.bf16.msra.mxu0 0
        %1090 = vmatprep.subr.bf16.mxu0 0
        %1091 = vmatpush1.bf16.msra.mxu0 0
        %1092 = vmatprep.subr.bf16.mxu0 0
        %1093 = vmatpush1.bf16.msra.mxu0 0
        %1094 = vmatprep.subr.bf16.mxu0 0
        %1095 = vmatpush1.bf16.msra.mxu0 0
        %1096 = vmatprep.mubr.bf16.mxu0 0
        %1097 = vmatmul.mubr.bf16.gmra.mrb[0].mxu0 %v1059
        %v1098 = vpop.f32.mrb[0].mxu0
        %v1099 = vadd.f32 0.0, %v1098
        %v1100 = vpop.f32.mrb[0].mxu0
        %v1101 = vpop.f32.mrb[0].mxu0
        %v1102 = vpop.f32.mrb[0].mxu0
        %1103 = vdwg.mxu0
        %v1104 = vpack.c.bf16 %v1099, %v1099
        %v1106 = vunpack.c.l.b16 %v1104
        %v1107 = vpack.c.b16 %v1106, %v1106
        %1108 = vrot.lane.b32.xlu0 %v1107, 16
        %v1109 = vpop.permute.xlu0 %1108
        %vm1111 = vcmask 191616
        %1112 = vst.msk [vmem:[#allocation4] sm:$0xf] %vm1111, %v1109
        %v1113 = vld [vmem:[#allocation2] sm:$0xf]
        %v1114 = vld [vmem:[#allocation3] sm:$0xf]
        %1115 = vrot.lane.b32.xlu0 %v744, 104
        %v1116 = vpop.permute.xlu0 %1115
        %v1118 = vunpack.c.l.b16 %v1113
        %v1119 = vpack.c.b16 %v1118, %v1118
        %1120 = vrot.lane.b32.xlu0 %v1119, 104
        %v1121 = vpop.permute.xlu0 %1120
        %v1123 = vsel %vm749, %v1116, 0
        %v1126 = vsel %vm749, %v1121, 0
        %1128 = vmatprep.subr.bf16.mxu0 0
        %1129 = vmatpush1.bf16.xpose.msra.mxu0 %v1126
        %1130 = vmatprep.subr.bf16.mxu0 0
        %1131 = vmatpush1.bf16.xpose.msra.mxu0 0
        %1132 = vmatprep.subr.bf16.mxu0 0
        %1133 = vmatpush1.bf16.xpose.msra.mxu0 0
        %1134 = vmatprep.subr.bf16.mxu0 0
        %1135 = vmatpush1.bf16.xpose.msra.mxu0 0
        %1136 = vmatprep.subr.bf16.mxu0 0
        %1137 = vmatpush1.bf16.xpose.msra.mxu0 0
        %1138 = vmatprep.subr.bf16.mxu0 0
        %1139 = vmatpush1.bf16.xpose.msra.mxu0 0
        %1140 = vmatprep.subr.bf16.mxu0 0
        %1141 = vmatpush1.bf16.xpose.msra.mxu0 0
        %1142 = vmatprep.subr.bf16.mxu0 0
        %1143 = vmatpush1.bf16.xpose.msra.mxu0 0
        %1144 = vmatprep.subr.bf16.mxu0 0
        %1145 = vmatpush1.bf16.xpose.msra.mxu0 0
        %1146 = vmatprep.subr.bf16.mxu0 0
        %1147 = vmatpush1.bf16.xpose.msra.mxu0 0
        %1148 = vmatprep.subr.bf16.mxu0 0
        %1149 = vmatpush1.bf16.xpose.msra.mxu0 0
        %1150 = vmatprep.subr.bf16.mxu0 0
        %1151 = vmatpush1.bf16.xpose.msra.mxu0 0
        %1152 = vmatprep.subr.bf16.mxu0 0
        %1153 = vmatpush1.bf16.xpose.msra.mxu0 0
        %1154 = vmatprep.subr.bf16.mxu0 0
        %1155 = vmatpush1.bf16.xpose.msra.mxu0 0
        %1156 = vmatprep.subr.bf16.mxu0 0
        %1157 = vmatpush1.bf16.xpose.msra.mxu0 0
        %1158 = vmatprep.subr.bf16.mxu0 0
        %1159 = vmatpush1.bf16.xpose.msra.mxu0 0
        %1160 = vmatprep.mubr.bf16.mxu0 0
        %1161 = vmatmul.mubr.bf16.gmra.mrb[0].mxu0 %v1123
        %v1162 = vpop.f32.mrb[0].mxu0
        %v1163 = vadd.f32 %v746, %v1162
        %v1164 = vpop.f32.mrb[0].mxu0
        %v1165 = vpop.f32.mrb[0].mxu0
        %v1166 = vpop.f32.mrb[0].mxu0
        %1167 = vdwg.mxu0
        %v1168 = vsel %vm749, %v1163, -inf
        %1169 = vmax.xlane.f32.xlu0 %v1168
        %v1170 = vpop.xlane.xlu0 %1169
        %v1171 = vsub.f32 %v1163, %v1170
        %v1172 = vmul.f32 %v1171, 1.442695
        %v1173 = vpow.pop %v1172
        %v1174 = vsel %vm749, %v1173, 0.0
        %1175 = vadd.xlane.f32.xlu0 %v1174
        %v1176 = vpop.xlane.xlu0 %1175
        %v1177 = vrcp.pop %v1176
        %v1178 = vmul.f32 %v1173, %v1177
        %v1179 = vpack.c.bf16 %v1178, %v1178
        %v1181 = vunpack.c.l.b16 %v1114
        %v1182 = vpack.c.b16 %v1181, %v1181
        %1183 = vrot.lane.b32.xlu0 %v1182, 104
        %v1184 = vpop.permute.xlu0 %1183
        %v1186 = vsel %vm749, %v1179, 0
        %v1189 = vsel %vm811, %v1184, 0
        %1191 = vmatprep.subr.bf16.mxu0 0
        %1192 = vmatpush1.bf16.msra.mxu0 %v1189
        %1193 = vmatprep.subr.bf16.mxu0 0
        %1194 = vmatpush1.bf16.msra.mxu0 0
        %1195 = vmatprep.subr.bf16.mxu0 0
        %1196 = vmatpush1.bf16.msra.mxu0 0
        %1197 = vmatprep.subr.bf16.mxu0 0
        %1198 = vmatpush1.bf16.msra.mxu0 0
        %1199 = vmatprep.subr.bf16.mxu0 0
        %1200 = vmatpush1.bf16.msra.mxu0 0
        %1201 = vmatprep.subr.bf16.mxu0 0
        %1202 = vmatpush1.bf16.msra.mxu0 0
        %1203 = vmatprep.subr.bf16.mxu0 0
        %1204 = vmatpush1.bf16.msra.mxu0 0
        %1205 = vmatprep.subr.bf16.mxu0 0
        %1206 = vmatpush1.bf16.msra.mxu0 0
        %1207 = vmatprep.subr.bf16.mxu0 0
        %1208 = vmatpush1.bf16.msra.mxu0 0
        %1209 = vmatprep.subr.bf16.mxu0 0
        %1210 = vmatpush1.bf16.msra.mxu0 0
        %1211 = vmatprep.subr.bf16.mxu0 0
        %1212 = vmatpush1.bf16.msra.mxu0 0
        %1213 = vmatprep.subr.bf16.mxu0 0
        %1214 = vmatpush1.bf16.msra.mxu0 0
        %1215 = vmatprep.subr.bf16.mxu0 0
        %1216 = vmatpush1.bf16.msra.mxu0 0
        %1217 = vmatprep.subr.bf16.mxu0 0
        %1218 = vmatpush1.bf16.msra.mxu0 0
        %1219 = vmatprep.subr.bf16.mxu0 0
        %1220 = vmatpush1.bf16.msra.mxu0 0
        %1221 = vmatprep.subr.bf16.mxu0 0
        %1222 = vmatpush1.bf16.msra.mxu0 0
        %1223 = vmatprep.mubr.bf16.mxu0 0
        %1224 = vmatmul.mubr.bf16.gmra.mrb[0].mxu0 %v1186
        %v1225 = vpop.f32.mrb[0].mxu0
        %v1226 = vadd.f32 0.0, %v1225
        %v1227 = vpop.f32.mrb[0].mxu0
        %v1228 = vpop.f32.mrb[0].mxu0
        %v1229 = vpop.f32.mrb[0].mxu0
        %1230 = vdwg.mxu0
        %v1231 = vpack.c.bf16 %v1226, %v1226
        %v1233 = vunpack.c.l.b16 %v1231
        %v1234 = vpack.c.b16 %v1233, %v1233
        %1235 = vrot.lane.b32.xlu0 %v1234, 24
        %v1236 = vpop.permute.xlu0 %1235
        %vm1238 = vcmask 257216
        %1239 = vst.msk [vmem:[#allocation4] sm:$0xf] %vm1238, %v1236
        %v1240 = vld [vmem:[#allocation4] sm:$0xf]
        %v1241 = vld [vmem:[%s9] sm:$0xf]
        %v1242 = vld [vmem:[%s9 + $0x4] sm:$0xf]
        %v1243 = vld [vmem:[%s9 + $0x8] sm:$0xf]
        %v1244 = vld [vmem:[%s9 + $0xc] sm:$0xf]
        %v1245 = vld [vmem:[%s10] sm:$0x1]
        %v1247 = vlaneseq
        %v1248 = vshrl.u32 %v1247, 7
        %v1249 = vsub.s32 0, %v1248
        %v1250 = vrot.slane %v1245, %v1249
        %v1256 = vunpack.c.l.b16 %v1241
        %v1257 = vunpack.c.l.b16 %v1242
        %v1258 = vunpack.c.l.b16 %v1243
        %v1259 = vunpack.c.l.b16 %v1244
        %v1260 = vpack.c.b16 %v1257, %v1256
        %v1261 = vpack.c.b16 %v1259, %v1258
        %v1265 = vsel %vm700, %v1240, 0
        %1267 = vmatprep.subr.bf16.mxu0 0
        %1268 = vmatpush1.bf16.msra.mxu0 %v1260
        %1269 = vmatprep.subr.bf16.mxu0 0
        %1270 = vmatpush1.bf16.msra.mxu0 %v1261
        %1271 = vmatprep.subr.bf16.mxu0 0
        %1272 = vmatpush1.bf16.msra.mxu0 0
        %1273 = vmatprep.subr.bf16.mxu0 0
        %1274 = vmatpush1.bf16.msra.mxu0 0
        %1275 = vmatprep.subr.bf16.mxu0 0
        %1276 = vmatpush1.bf16.msra.mxu0 0
        %1277 = vmatprep.subr.bf16.mxu0 0
        %1278 = vmatpush1.bf16.msra.mxu0 0
        %1279 = vmatprep.subr.bf16.mxu0 0
        %1280 = vmatpush1.bf16.msra.mxu0 0
        %1281 = vmatprep.subr.bf16.mxu0 0
        %1282 = vmatpush1.bf16.msra.mxu0 0
        %1283 = vmatprep.subr.bf16.mxu0 0
        %1284 = vmatpush1.bf16.msra.mxu0 0
        %1285 = vmatprep.subr.bf16.mxu0 0
        %1286 = vmatpush1.bf16.msra.mxu0 0
        %1287 = vmatprep.subr.bf16.mxu0 0
        %1288 = vmatpush1.bf16.msra.mxu0 0
        %1289 = vmatprep.subr.bf16.mxu0 0
        %1290 = vmatpush1.bf16.msra.mxu0 0
        %1291 = vmatprep.subr.bf16.mxu0 0
        %1292 = vmatpush1.bf16.msra.mxu0 0
        %1293 = vmatprep.subr.bf16.mxu0 0
        %1294 = vmatpush1.bf16.msra.mxu0 0
        %1295 = vmatprep.subr.bf16.mxu0 0
        %1296 = vmatpush1.bf16.msra.mxu0 0
        %1297 = vmatprep.subr.bf16.mxu0 0
        %1298 = vmatpush1.bf16.msra.mxu0 0
        %1299 = vmatprep.mubr.bf16.mxu0 0
        %1300 = vmatmul.mubr.bf16.gmra.mrb[0].mxu0 %v1265
        %v1301 = vpop.f32.mrb[0].mxu0
        %v1302 = vadd.f32 %v1250, %v1301
        %v1303 = vpop.f32.mrb[0].mxu0
        %v1304 = vpop.f32.mrb[0].mxu0
        %v1305 = vpop.f32.mrb[0].mxu0
        %1306 = vdwg.mxu0
        %1307 = vst.msk [vmem:[%s534] sm:$0xff] %vm700, %v1302
        %s1308 = sand.u32 %s305, 1
        %s1309 = scalar_lea.sflag [#allocation7], %s1308
        %s1310 = sand.u32 %s305, 1
        %s1311 = smul.addr %s1310, 8
        %s1312 = scalar_lea.vmem [#allocation16], %s1311
        // Predicated region
        $region93: #{tpu_custom_call.1} parent=63 // pred_check
          %p1313 = pneg %p315
        $region94: #{tpu_custom_call.1} parent=63 // pred_check_branch
          %1315 = sbr.rel (%p1313) target = $region96
        $region95: #{tpu_custom_call.1} parent=63 // pred_region
          %s1317 = ssub.s32 128, 128
          %1318 = vsyncadd %s1309, %s1317
          %s1319 = sadd.s32 %s38, %s37
          %s1320 = smul.addr %s1319, 128
          %s1321 = scalar_lea.hbm %s11, %s1320
          %s1323 = sshll.u32 %s1312, 4
          %s1324 = int_to_ptr.vmem [resolvable:$true] %s1323
          %1326 = dma.vmem_to_hbm [thread:$0]  %s1324, 128, %s1321, %s1309
        $region96: #{tpu_custom_call.1} parent=63 // pred_fallthru
          _
      $region64: #{tpu_custom_call.1} parent=5 // pred_fallthru
        _
      %p1327 = scmp.le.s32.totalorder 2, %s28
      // Predicated region
      $region97: #{tpu_custom_call.1} parent=5 // pred_check
        %p1328 = pneg %p1327
      $region98: #{tpu_custom_call.1} parent=5 // pred_check_branch
        %1330 = sbr.rel (%p1328) target = $region100
      $region99: #{tpu_custom_call.1} parent=5 // pred_region
        %s1331 = ssub.s32 %s28, 2
        // Predicated region
        $region101: #{tpu_custom_call.1} parent=99 // pred_check
          %p1332 = pneg %p321
        $region102: #{tpu_custom_call.1} parent=99 // pred_check_branch
          %1334 = sbr.rel (%p1332) target = $region104
        $region103: #{tpu_custom_call.1} parent=99 // pred_region
          %s1335 = sand.u32 %s306, 1
          %s1336 = scalar_lea.sflag [#allocation7], %s1335
          %s1337 = sand.u32 %s306, 1
          %s1338 = smul.addr %s1337, 8
          %s1339 = scalar_lea.vmem [#allocation16], %s1338
          %1340 = dma.done %s1336, 128
        $region104: #{tpu_custom_call.1} parent=99 // pred_fallthru
          _
      $region100: #{tpu_custom_call.1} parent=5 // pred_fallthru
        _
    $region6: #{tpu_custom_call.1} parent=1 // loop_footer
      %s32 = sadd.s32 1, %s28
    $region7: #{tpu_custom_call.1} parent=1 // loop_footer_branch
      %27 = sbr.rel target = $region3
    $region8: #{tpu_custom_call.1} parent=1 // loop_exit
      _
    %1341 = vsyncpa [#allocation6], 1
    %s1342 = scalar_lea.sflag [#allocation6], 1
    %1343 = vsyncpa %s1342, 1
    %1344 = vsyncpa [#allocation9], 1
    %s1345 = scalar_lea.sflag [#allocation9], 1
    %1346 = vsyncpa %s1345, 1
    %1347 = vsyncpa [#allocation12], 1
    %1348 = vsyncpa [#allocation15], 1
    %1349 = vsyncpa [#allocation7], 1
    %s1350 = scalar_lea.sflag [#allocation7], 1
    %1351 = vsyncpa %s1350, 1

</llo_original>
